<compile_context>
chip_gen: v5e
topology: v5e:2x2
jax: 0.10.0
libtpu: 0.0.40
codegen_flags: <defaults>
</compile_context>

<pallas_src>
import functools
import math

import jax
import jax.numpy as jnp
from jax.experimental import pallas as pl
from jax.experimental.pallas import tpu as pltpu


def _round_up(x, m):
    return ((x + m - 1) // m) * m


def _pad2(a, rows, cols):
    return jnp.pad(a, ((0, rows - a.shape[0]), (0, cols - a.shape[1])))


# --------------------------- kernels ---------------------------------------

def _linear_kernel(x_ref, w_ref, b_ref, o_ref):
    acc = jnp.dot(x_ref[...], w_ref[...], preferred_element_type=jnp.float32)
    o_ref[...] = (acc + b_ref[...]).astype(o_ref.dtype)


def _ln_residual_kernel(x_ref, r_ref, g_ref, b_ref, o_ref, *, e_real):
    # LayerNorm(x + residual) with stats over the real E lanes only.
    y = x_ref[...].astype(jnp.float32) + r_ref[...].astype(jnp.float32)
    mean = jnp.sum(y, axis=-1, keepdims=True) * (1.0 / e_real)
    lane = jax.lax.broadcasted_iota(jnp.int32, y.shape, 1)
    diff = jnp.where(lane < e_real, y - mean, 0.0)   # zero padded lanes
    var = jnp.sum(diff * diff, axis=-1, keepdims=True) * (1.0 / e_real)
    inv = jax.lax.rsqrt(var + 1e-5)
    # padded lanes stay exactly zero (gamma/beta padded with zeros)
    o_ref[...] = (diff * inv * g_ref[...] + b_ref[...]).astype(o_ref.dtype)


def _attention_kernel(q_ref, k_ref, v_ref, o_ref, *, scale, s_real):
    q = q_ref[0]                                   # [S_pad, Dh_pad]
    k = k_ref[0]
    v = v_ref[0]
    s = jax.lax.dot_general(q, k, (((1,), (1,)), ((), ())),
                            preferred_element_type=jnp.float32) * scale
    key_idx = jax.lax.broadcasted_iota(jnp.int32, s.shape, 1)
    s = jnp.where(key_idx < s_real, s, -1e30)       # mask padded keys
    m = jnp.max(s, axis=-1, keepdims=True)
    p = jnp.exp(s - m)
    p = p / jnp.sum(p, axis=-1, keepdims=True)
    o = jnp.dot(p.astype(v.dtype), v, preferred_element_type=jnp.float32)
    o_ref[0] = o.astype(o_ref.dtype)


def _ffn_kernel(x_ref, w1_ref, b1_ref, w2_ref, b2_ref, o_ref, acc_ref):
    f = pl.program_id(1)

    @pl.when(f == 0)
    def _init():
        acc_ref[...] = jnp.zeros_like(acc_ref)

    # dense1 slice: [tm, E] @ [E, tf] -> bias + ReLU  (dropout1 = identity)
    h = jnp.dot(x_ref[...], w1_ref[...], preferred_element_type=jnp.float32)
    h = jnp.maximum(h + b1_ref[...], 0.0)
    # dense2 partial: accumulate [tm, tf] @ [tf, E] into f32 accumulator
    acc_ref[...] += jnp.dot(h.astype(w2_ref.dtype), w2_ref[...],
                            preferred_element_type=jnp.float32)

    @pl.when(f == pl.num_programs(1) - 1)
    def _finalize():
        # dropout2 = identity (eval mode)
        o_ref[...] = (acc_ref[...] + b2_ref[...]).astype(o_ref.dtype)


# --------------------------- wrappers ---------------------------------------

def _linear(x_pad, w, b, *, block_m, block_n, compute_dtype):
    """x_pad: [M_pad, K_pad] (zero-padded); w: [K, N]; b: [N] -> [M_pad, N_pad]."""
    M_pad, K_pad = x_pad.shape
    K, N = w.shape
    bn = min(_round_up(block_n, 128), _round_up(N, 128))
    N_pad = _round_up(N, bn)
    w_p = _pad2(w.astype(compute_dtype), K_pad, N_pad)
    b_p = jnp.pad(b.astype(jnp.float32), (0, N_pad - N)).reshape(1, N_pad)
    return pl.pallas_call(
        _linear_kernel,
        out_shape=jax.ShapeDtypeStruct((M_pad, N_pad), compute_dtype),
        grid_spec=pltpu.PrefetchScalarGridSpec(
            num_scalar_prefetch=0,
            grid=(M_pad // block_m, N_pad // bn),
            in_specs=[
                pl.BlockSpec((block_m, K_pad), lambda i, j: (i, 0)),
                pl.BlockSpec((K_pad, bn), lambda i, j: (0, j)),
                pl.BlockSpec((1, bn), lambda i, j: (0, j)),
            ],
            out_specs=pl.BlockSpec((block_m, bn), lambda i, j: (i, j)),
        ),
        compiler_params=pltpu.CompilerParams(
            dimension_semantics=("parallel", "parallel")),
    )(x_pad, w_p, b_p)


def _layer_norm(x_pad, res_pad, gamma, beta, *, e_real, block_m, compute_dtype):
    M_pad, E_pad = x_pad.shape
    g = jnp.pad(gamma.astype(jnp.float32), (0, E_pad - e_real)).reshape(1, E_pad)
    b = jnp.pad(beta.astype(jnp.float32), (0, E_pad - e_real)).reshape(1, E_pad)
    kern = functools.partial(_ln_residual_kernel, e_real=e_real)
    return pl.pallas_call(
        kern,
        out_shape=jax.ShapeDtypeStruct((M_pad, E_pad), compute_dtype),
        grid_spec=pltpu.PrefetchScalarGridSpec(
            num_scalar_prefetch=0,
            grid=(M_pad // block_m,),
            in_specs=[
                pl.BlockSpec((block_m, E_pad), lambda i: (i, 0)),
                pl.BlockSpec((block_m, E_pad), lambda i: (i, 0)),
                pl.BlockSpec((1, E_pad), lambda i: (0, 0)),
                pl.BlockSpec((1, E_pad), lambda i: (0, 0)),
            ],
            out_specs=pl.BlockSpec((block_m, E_pad), lambda i: (i, 0)),
        ),
        compiler_params=pltpu.CompilerParams(
            dimension_semantics=("parallel",)),
    )(x_pad, res_pad, g, b)


def _mha(y_pad, wqkv, bqkv, wo, bo, *, B, S, E, H, block_m, block_n,
         compute_dtype):
    M = B * S
    M_pad, E_pad = y_pad.shape
    Dh = E // H
    Dh_pad = _round_up(Dh, 128)
    S_pad = _round_up(S, 128)

    # fused QKV projection
    qkv = _linear(y_pad, wqkv, bqkv, block_m=block_m, block_n=block_n,
                  compute_dtype=compute_dtype)
    qkv = qkv[:M, :3 * E].reshape(B, S, 3, H, Dh)
    qkv = jnp.transpose(qkv, (2, 0, 3, 1, 4)).reshape(3, B * H, S, Dh)
    qkv = jnp.pad(qkv, ((0, 0), (0, 0), (0, S_pad - S), (0, Dh_pad - Dh)))
    q, k, v = qkv[0], qkv[1], qkv[2]

    kern = functools.partial(_attention_kernel,
                             scale=1.0 / math.sqrt(Dh), s_real=S)
    attn = pl.pallas_call(
        kern,
        out_shape=jax.ShapeDtypeStruct((B * H, S_pad, Dh_pad), compute_dtype),
        grid_spec=pltpu.PrefetchScalarGridSpec(
            num_scalar_prefetch=0,
            grid=(B * H,),
            in_specs=[pl.BlockSpec((1, S_pad, Dh_pad), lambda i: (i, 0, 0))] * 3,
            out_specs=pl.BlockSpec((1, S_pad, Dh_pad), lambda i: (i, 0, 0)),
        ),
        compiler_params=pltpu.CompilerParams(
            dimension_semantics=("parallel",)),
    )(q, k, v)

    attn = attn[:, :S, :Dh].reshape(B, H, S, Dh)
    attn = jnp.transpose(attn, (0, 2, 1, 3)).reshape(M, E)
    attn_pad = _pad2(attn, M_pad, E_pad)
    # output projection
    return _linear(attn_pad, wo, bo, block_m=block_m, block_n=block_n,
                   compute_dtype=compute_dtype)


def _ffn(x_pad, w1, b1, w2, b2, *, block_m, block_f, compute_dtype):
    M_pad, E_pad = x_pad.shape
    E, F = w1.shape
    tf = min(_round_up(block_f, 128), _round_up(F, 128))
    F_pad = _round_up(F, tf)
    n_f = F_pad // tf
    w1p = _pad2(w1.astype(compute_dtype), E_pad, F_pad)
    w2p = _pad2(w2.astype(compute_dtype), F_pad, E_pad)
    b1p = jnp.pad(b1.astype(jnp.float32), (0, F_pad - F)).reshape(1, F_pad)
    b2p = jnp.pad(b2.astype(jnp.float32), (0, E_pad - E)).reshape(1, E_pad)

    isz = jnp.dtype(compute_dtype).itemsize
    vmem_bytes = (2 * block_m * E_pad * isz + 2 * E_pad * tf * isz
                  + 2 * tf * E_pad * isz + 2 * (tf + E_pad) * 4
                  + 2 * block_m * E_pad * isz
                  + block_m * E_pad * 4 + block_m * tf * 4)
    vmem_limit = int(min(max(2 * vmem_bytes, 32 * 1024 * 1024),
                         64 * 1024 * 1024))

    return pl.pallas_call(
        _ffn_kernel,
        out_shape=jax.ShapeDtypeStruct((M_pad, E_pad), compute_dtype),
        grid_spec=pltpu.PrefetchScalarGridSpec(
            num_scalar_prefetch=0,
            grid=(M_pad // block_m, n_f),
            in_specs=[
                pl.BlockSpec((block_m, E_pad), lambda i, f: (i, 0)),
                pl.BlockSpec((E_pad, tf), lambda i, f: (0, f)),
                pl.BlockSpec((1, tf), lambda i, f: (0, f)),
                pl.BlockSpec((tf, E_pad), lambda i, f: (f, 0)),
                pl.BlockSpec((1, E_pad), lambda i, f: (0, 0)),
            ],
            out_specs=pl.BlockSpec((block_m, E_pad), lambda i, f: (i, 0)),
            scratch_shapes=[pltpu.VMEM((block_m, E_pad), jnp.float32)],
        ),
        compiler_params=pltpu.CompilerParams(
            dimension_semantics=("parallel", "arbitrary"),
            vmem_limit_bytes=vmem_limit),
    )(x_pad, w1p, b1p, w2p, b2p)


@functools.partial(jax.jit,
                   static_argnames=("num_heads", "compute_dtype",
                                    "block_m", "block_n", "block_f"))
def transformer_encoder(x, params, *, num_heads, compute_dtype=jnp.bfloat16,
                        block_m=256, block_n=512, block_f=512):
    """x: [B, S, E] -> [B, S, E]  (eval-mode TransformerEncoder forward)."""
    B, S, E = x.shape
    assert E % num_heads == 0
    M = B * S
    E_pad = _round_up(E, 128)
    bm = min(_round_up(block_m, 16), _round_up(M, 16))
    M_pad = _round_up(M, bm)

    x_pad = _pad2(x.reshape(M, E), M_pad, E_pad).astype(compute_dtype)
    zeros = jnp.zeros_like(x_pad)

    # top-level layerNorm
    y = _layer_norm(x_pad, zeros, params["ln0_g"], params["ln0_b"],
                    e_real=E, block_m=bm, compute_dtype=compute_dtype)

    for lp in params["layers"]:
        attn_out = _mha(y, lp["wqkv"], lp["bqkv"], lp["wo"], lp["bo"],
                        B=B, S=S, E=E, H=num_heads,
                        block_m=bm, block_n=block_n,
                        compute_dtype=compute_dtype)
        # attnDropout: identity (eval mode)
        y1 = _layer_norm(attn_out, y, lp["ln1_g"], lp["ln1_b"],
                         e_real=E, block_m=bm, compute_dtype=compute_dtype)
        ff = _ffn(y1, lp["w1"], lp["b1"], lp["w2"], lp["b2"],
                  block_m=bm, block_f=block_f, compute_dtype=compute_dtype)
        y = _layer_norm(ff, y1, lp["ln2_g"], lp["ln2_b"],
                        e_real=E, block_m=bm, compute_dtype=compute_dtype)

    return y[:M, :E].reshape(B, S, E).astype(x.dtype)


# --------------------------- params & reference -----------------------------

def init_params(key, embedding_dim, ff_dim, num_layers, dtype=jnp.float32):
    E, F = embedding_dim, ff_dim

    def uniform(k, shape, bound):
        return jax.random.uniform(k, shape, dtype, -bound, bound)

    keys = jax.random.split(key, num_layers + 1)
    params = {
        "ln0_g": jnp.ones((E,), dtype) + uniform(keys[0], (E,), 0.1),
        "ln0_b": uniform(jax.random.fold_in(keys[0], 1), (E,), 0.1),
        "layers": [],
    }
    be = 1.0 / math.sqrt(E)
    bf = 1.0 / math.sqrt(F)
    for l in range(num_layers):
        k = jax.random.split(keys[l + 1], 12)
        params["layers"].append({
            "wqkv": uniform(k[0], (E, 3 * E), be),
            "bqkv": uniform(k[1], (3 * E,), be),
            "wo": uniform(k[2], (E, E), be),
            "bo": uniform(k[3], (E,), be),
            "ln1_g": jnp.ones((E,), dtype) + uniform(k[4], (E,), 0.1),
            "ln1_b": uniform(k[5], (E,), 0.1),
            "w1": uniform(k[6], (E, F), be),
            "b1": uniform(k[7], (F,), be),
            "w2": uniform(k[8], (F, E), bf),
            "b2": uniform(k[9], (E,), bf),
            "ln2_g": jnp.ones((E,), dtype) + uniform(k[10], (E,), 0.1),
            "ln2_b": uniform(k[11], (E,), 0.1),
        })
    return params


def ref_forward(x, params, num_heads):
    """Pure-JAX eval-mode reference of the PyTorch module's forward."""
    def ln(y, g, b):
        mu = jnp.mean(y, axis=-1, keepdims=True)
        var = jnp.mean((y - mu) ** 2, axis=-1, keepdims=True)
        return (y - mu) / jnp.sqrt(var + 1e-5) * g + b

    B, S, E = x.shape
    H = num_heads
    Dh = E // H
    with jax.default_matmul_precision("float32"):
        y = ln(x, params["ln0_g"], params["ln0_b"])
        for lp in params["layers"]:
            qkv = y @ lp["wqkv"] + lp["bqkv"]
            q, k, v = jnp.split(qkv, 3, axis=-1)

            def heads(t):
                return t.reshape(B, S, H, Dh).transpose(0, 2, 1, 3)

            qh, kh, vh = heads(q), heads(k), heads(v)
            s = jnp.einsum("bhqd,bhkd->bhqk", qh, kh) / math.sqrt(Dh)
            p = jax.nn.softmax(s, axis=-1)
            o = jnp.einsum("bhqk,bhkd->bhqd", p, vh)
            o = o.transpose(0, 2, 1, 3).reshape(B, S, E)
            attn_out = o @ lp["wo"] + lp["bo"]
            y1 = ln(attn_out + y, lp["ln1_g"], lp["ln1_b"])
            h = jnp.maximum(y1 @ lp["w1"] + lp["b1"], 0.0)
            ff = h @ lp["w2"] + lp["b2"]
            y = ln(ff + y1, lp["ln2_g"], lp["ln2_b"])
    return y


if __name__ == "__main__":
    # batch=2, seq=8, embedding_dim=32, head_num=4, ff_dim=64, 2 encoder layers
    B, S, E, H, F, L = 2, 8, 32, 4, 64, 2
    key = jax.random.PRNGKey(0)
    kx, kp = jax.random.split(key)
    x = jax.random.normal(kx, (B, S, E), dtype=jnp.float32)
    params = init_params(kp, E, F, L)

    ref = ref_forward(x, params, H)

    # f32 path: tight tolerance.
    out_f32 = jax.block_until_ready(
        transformer_encoder(x, params, num_heads=H,
                            compute_dtype=jnp.float32))
    assert out_f32.shape == (B, S, E)
    assert jnp.allclose(out_f32, ref, atol=5e-3, rtol=5e-3)

    # default fast path: bf16 MXU inputs, f32 accumulation.
    out_bf16 = jax.block_until_ready(
        transformer_encoder(x, params, num_heads=H,
                            compute_dtype=jnp.bfloat16))
    assert out_bf16.shape == (B, S, E)
    assert jnp.allclose(out_bf16, ref, atol=2.5e-1, rtol=2.5e-1)

    print("KERNEL_OK")
</pallas_src>

<mosaic_0001>
module attributes {stable_mosaic.version = 11 : i64} {
  func.func @_ln_residual_kernel(%arg0: i32, %arg1: memref<16x128xf32, #tpu.memory_space<vmem>>, %arg2: memref<16x128xf32, #tpu.memory_space<vmem>>, %arg3: memref<1x128xf32, #tpu.memory_space<vmem>>, %arg4: memref<1x128xf32, #tpu.memory_space<vmem>>, %arg5: memref<16x128xf32, #tpu.memory_space<vmem>>) attributes {dimension_semantics = [#tpu.dimension_semantics<parallel>], iteration_bounds = array<i64: 1>, scalar_prefetch = 0 : i64, scratch_operands = 0 : i64, tpu.core_type = #tpu.core_type<tc>, window_params = [{transform_indices = @transform_0, window_bounds = array<i64: 16, 128>}, {transform_indices = @transform_1, window_bounds = array<i64: 16, 128>}, {pipeline_mode = #tpu.pipeline_mode<synchronous>, transform_indices = @transform_2, window_bounds = array<i64: 1, 128>}, {pipeline_mode = #tpu.pipeline_mode<synchronous>, transform_indices = @transform_3, window_bounds = array<i64: 1, 128>}, {transform_indices = @transform_4, window_bounds = array<i64: 16, 128>}]} {
    %c0 = arith.constant 0 : index
    %c0_0 = arith.constant 0 : index
    %0 = vector.load %arg1[%c0, %c0_0] : memref<16x128xf32, #tpu.memory_space<vmem>>, vector<16x128xf32>
    %c0_1 = arith.constant 0 : index
    %c0_2 = arith.constant 0 : index
    %1 = vector.load %arg2[%c0_1, %c0_2] : memref<16x128xf32, #tpu.memory_space<vmem>>, vector<16x128xf32>
    %2 = arith.addf %0, %1 : vector<16x128xf32>
    %cst = arith.constant dense<0.000000e+00> : vector<16xf32>
    %3 = vector.multi_reduction <add>, %2, %cst [1] : vector<16x128xf32> to vector<16xf32>
    %4 = vector.shape_cast %3 : vector<16xf32> to vector<16x1xf32>
    %cst_3 = arith.constant 3.125000e-02 : f32
    %5 = vector.broadcast %cst_3 : f32 to vector<16x1xf32>
    %6 = arith.mulf %4, %5 : vector<16x1xf32>
    %7 = tpu.iota {dimensions = array<i32: 1>} : vector<16x128xi32>
    %c32_i32 = arith.constant 32 : i32
    %8 = vector.broadcast %c32_i32 : i32 to vector<16x128xi32>
    %9 = arith.cmpi slt, %7, %8 : vector<16x128xi32>
    %10 = vector.broadcast %6 : vector<16x1xf32> to vector<16x128xf32>
    %11 = arith.subf %2, %10 : vector<16x128xf32>
    %cst_4 = arith.constant 0.000000e+00 : f32
    %12 = vector.broadcast %cst_4 : f32 to vector<16x128xf32>
    %13 = arith.select %9, %11, %12 : vector<16x128xi1>, vector<16x128xf32>
    %14 = arith.mulf %13, %13 : vector<16x128xf32>
    %cst_5 = arith.constant dense<0.000000e+00> : vector<16xf32>
    %15 = vector.multi_reduction <add>, %14, %cst_5 [1] : vector<16x128xf32> to vector<16xf32>
    %16 = vector.shape_cast %15 : vector<16xf32> to vector<16x1xf32>
    %cst_6 = arith.constant 3.125000e-02 : f32
    %17 = vector.broadcast %cst_6 : f32 to vector<16x1xf32>
    %18 = arith.mulf %16, %17 : vector<16x1xf32>
    %cst_7 = arith.constant 9.99999974E-6 : f32
    %19 = vector.broadcast %cst_7 : f32 to vector<16x1xf32>
    %20 = arith.addf %18, %19 : vector<16x1xf32>
    %21 = math.rsqrt %20 : vector<16x1xf32>
    %22 = vector.broadcast %21 : vector<16x1xf32> to vector<16x128xf32>
    %23 = arith.mulf %13, %22 : vector<16x128xf32>
    %c0_8 = arith.constant 0 : index
    %c0_9 = arith.constant 0 : index
    %24 = vector.load %arg3[%c0_8, %c0_9] : memref<1x128xf32, #tpu.memory_space<vmem>>, vector<1x128xf32>
    %25 = vector.broadcast %24 : vector<1x128xf32> to vector<16x128xf32>
    %26 = arith.mulf %23, %25 : vector<16x128xf32>
    %c0_10 = arith.constant 0 : index
    %c0_11 = arith.constant 0 : index
    %27 = vector.load %arg4[%c0_10, %c0_11] : memref<1x128xf32, #tpu.memory_space<vmem>>, vector<1x128xf32>
    %28 = vector.broadcast %27 : vector<1x128xf32> to vector<16x128xf32>
    %29 = arith.addf %26, %28 : vector<16x128xf32>
    %c0_12 = arith.constant 0 : index
    %c0_13 = arith.constant 0 : index
    %30 = vector.load %arg5[%c0_12, %c0_13] : memref<16x128xf32, #tpu.memory_space<vmem>>, vector<16x128xf32>
    tpu.vector_store %arg5[%c0_12, %c0_13], %29 {strides = array<i32>} : memref<16x128xf32, #tpu.memory_space<vmem>>, vector<16x128xf32>,
    return
  }
  func.func @transform_0(%arg0: i32) -> (i32, i32) {
    %c0_i32 = arith.constant 0 : i32
    %c0_i32_0 = arith.constant 0 : i32
    return %arg0, %c0_i32 : i32, i32
  }
  func.func @transform_1(%arg0: i32) -> (i32, i32) {
    %c0_i32 = arith.constant 0 : i32
    %c0_i32_0 = arith.constant 0 : i32
    return %arg0, %c0_i32 : i32, i32
  }
  func.func @transform_2(%arg0: i32) -> (i32, i32) {
    %c0_i32 = arith.constant 0 : i32
    %c0_i32_0 = arith.constant 0 : i32
    %c0_i32_1 = arith.constant 0 : i32
    return %c0_i32, %c0_i32_0 : i32, i32
  }
  func.func @transform_3(%arg0: i32) -> (i32, i32) {
    %c0_i32 = arith.constant 0 : i32
    %c0_i32_0 = arith.constant 0 : i32
    %c0_i32_1 = arith.constant 0 : i32
    return %c0_i32, %c0_i32_0 : i32, i32
  }
  func.func @transform_4(%arg0: i32) -> (i32, i32) {
    %c0_i32 = arith.constant 0 : i32
    %c0_i32_0 = arith.constant 0 : i32
    return %arg0, %c0_i32 : i32, i32
  }
}

module attributes {stable_mosaic.version = 11 : i64} {
  func.func @_linear_kernel(%arg0: i32, %arg1: i32, %arg2: memref<16x128xf32, #tpu.memory_space<vmem>>, %arg3: memref<128x128xf32, #tpu.memory_space<vmem>>, %arg4: memref<1x128xf32, #tpu.memory_space<vmem>>, %arg5: memref<16x128xf32, #tpu.memory_space<vmem>>) attributes {dimension_semantics = [#tpu.dimension_semantics<parallel>, #tpu.dimension_semantics<parallel>], iteration_bounds = array<i64: 1, 1>, scalar_prefetch = 0 : i64, scratch_operands = 0 : i64, tpu.core_type = #tpu.core_type<tc>, window_params = [{transform_indices = @transform_0, window_bounds = array<i64: 16, 128>}, {transform_indices = @transform_1, window_bounds = array<i64: 128, 128>}, {transform_indices = @transform_2, window_bounds = array<i64: 1, 128>}, {transform_indices = @transform_3, window_bounds = array<i64: 16, 128>}]} {
    %c0 = arith.constant 0 : index
    %c0_0 = arith.constant 0 : index
    %0 = vector.load %arg2[%c0, %c0_0] : memref<16x128xf32, #tpu.memory_space<vmem>>, vector<16x128xf32>
    %c0_1 = arith.constant 0 : index
    %c0_2 = arith.constant 0 : index
    %1 = vector.load %arg3[%c0_1, %c0_2] : memref<128x128xf32, #tpu.memory_space<vmem>>, vector<128x128xf32>
    %cst = arith.constant dense<0.000000e+00> : vector<16x128xf32>
    %2 = tpu.matmul %0, %1, %cst {dimension_numbers = #tpu.dot_dimension_numbers<[1], [0], [0], [1], [0, 0, 1, 1], [], []>} : vector<16x128xf32>, vector<128x128xf32>, vector<16x128xf32> -> vector<16x128xf32>
    %c0_3 = arith.constant 0 : index
    %c0_4 = arith.constant 0 : index
    %3 = vector.load %arg4[%c0_3, %c0_4] : memref<1x128xf32, #tpu.memory_space<vmem>>, vector<1x128xf32>
    %4 = vector.broadcast %3 : vector<1x128xf32> to vector<16x128xf32>
    %5 = arith.addf %2, %4 : vector<16x128xf32>
    %c0_5 = arith.constant 0 : index
    %c0_6 = arith.constant 0 : index
    %6 = vector.load %arg5[%c0_5, %c0_6] : memref<16x128xf32, #tpu.memory_space<vmem>>, vector<16x128xf32>
    tpu.vector_store %arg5[%c0_5, %c0_6], %5 {strides = array<i32>} : memref<16x128xf32, #tpu.memory_space<vmem>>, vector<16x128xf32>,
    return
  }
  func.func @transform_0(%arg0: i32, %arg1: i32) -> (i32, i32) {
    %c0_i32 = arith.constant 0 : i32
    %c0_i32_0 = arith.constant 0 : i32
    return %arg0, %c0_i32 : i32, i32
  }
  func.func @transform_1(%arg0: i32, %arg1: i32) -> (i32, i32) {
    %c0_i32 = arith.constant 0 : i32
    %c0_i32_0 = arith.constant 0 : i32
    return %c0_i32, %arg1 : i32, i32
  }
  func.func @transform_2(%arg0: i32, %arg1: i32) -> (i32, i32) {
    %c0_i32 = arith.constant 0 : i32
    %c0_i32_0 = arith.constant 0 : i32
    return %c0_i32, %arg1 : i32, i32
  }
  func.func @transform_3(%arg0: i32, %arg1: i32) -> (i32, i32) {
    %c0_i32 = arith.constant 0 : i32
    return %arg0, %arg1 : i32, i32
  }
}

module attributes {stable_mosaic.version = 11 : i64} {
  func.func @_attention_kernel(%arg0: i32, %arg1: memref<1x128x128xf32, #tpu.memory_space<vmem>>, %arg2: memref<1x128x128xf32, #tpu.memory_space<vmem>>, %arg3: memref<1x128x128xf32, #tpu.memory_space<vmem>>, %arg4: memref<1x128x128xf32, #tpu.memory_space<vmem>>) attributes {dimension_semantics = [#tpu.dimension_semantics<parallel>], iteration_bounds = array<i64: 8>, scalar_prefetch = 0 : i64, scratch_operands = 0 : i64, tpu.core_type = #tpu.core_type<tc>, window_params = [{transform_indices = @transform_0, window_bounds = array<i64: 1, 128, 128>}, {transform_indices = @transform_1, window_bounds = array<i64: 1, 128, 128>}, {transform_indices = @transform_2, window_bounds = array<i64: 1, 128, 128>}, {transform_indices = @transform_3, window_bounds = array<i64: 1, 128, 128>}]} {
    %c0 = arith.constant 0 : index
    %c0_0 = arith.constant 0 : index
    %c0_1 = arith.constant 0 : index
    %0 = vector.load %arg1[%c0, %c0_0, %c0_1] : memref<1x128x128xf32, #tpu.memory_space<vmem>>, vector<1x128x128xf32>
    %1 = vector.shape_cast %0 : vector<1x128x128xf32> to vector<128x128xf32>
    %c0_2 = arith.constant 0 : index
    %c0_3 = arith.constant 0 : index
    %c0_4 = arith.constant 0 : index
    %2 = vector.load %arg2[%c0_2, %c0_3, %c0_4] : memref<1x128x128xf32, #tpu.memory_space<vmem>>, vector<1x128x128xf32>
    %3 = vector.shape_cast %2 : vector<1x128x128xf32> to vector<128x128xf32>
    %c0_5 = arith.constant 0 : index
    %c0_6 = arith.constant 0 : index
    %c0_7 = arith.constant 0 : index
    %4 = vector.load %arg3[%c0_5, %c0_6, %c0_7] : memref<1x128x128xf32, #tpu.memory_space<vmem>>, vector<1x128x128xf32>
    %5 = vector.shape_cast %4 : vector<1x128x128xf32> to vector<128x128xf32>
    %cst = arith.constant dense<0.000000e+00> : vector<128x128xf32>
    %6 = tpu.matmul %1, %3, %cst {dimension_numbers = #tpu.dot_dimension_numbers<[1], [1], [0], [0], [0, 0, 1, 0], [], []>} : vector<128x128xf32>, vector<128x128xf32>, vector<128x128xf32> -> vector<128x128xf32>
    %cst_8 = arith.constant 0.353553385 : f32
    %7 = vector.broadcast %cst_8 : f32 to vector<128x128xf32>
    %8 = arith.mulf %6, %7 : vector<128x128xf32>
    %9 = tpu.iota {dimensions = array<i32: 1>} : vector<128x128xi32>
    %c8_i32 = arith.constant 8 : i32
    %10 = vector.broadcast %c8_i32 : i32 to vector<128x128xi32>
    %11 = arith.cmpi slt, %9, %10 : vector<128x128xi32>
    %cst_9 = arith.constant -1.000000e+30 : f32
    %12 = vector.broadcast %cst_9 : f32 to vector<128x128xf32>
    %13 = arith.select %11, %8, %12 : vector<128x128xi1>, vector<128x128xf32>
    %cst_10 = arith.constant dense<0xFF800000> : vector<128xf32>
    %14 = vector.multi_reduction <maximumf>, %13, %cst_10 [1] : vector<128x128xf32> to vector<128xf32>
    %15 = vector.shape_cast %14 : vector<128xf32> to vector<128x1xf32>
    %16 = vector.broadcast %15 : vector<128x1xf32> to vector<128x128xf32>
    %17 = arith.subf %13, %16 : vector<128x128xf32>
    %18 = math.exp %17 : vector<128x128xf32>
    %cst_11 = arith.constant dense<0.000000e+00> : vector<128xf32>
    %19 = vector.multi_reduction <add>, %18, %cst_11 [1] : vector<128x128xf32> to vector<128xf32>
    %20 = vector.shape_cast %19 : vector<128xf32> to vector<128x1xf32>
    %21 = vector.broadcast %20 : vector<128x1xf32> to vector<128x128xf32>
    %22 = arith.divf %18, %21 : vector<128x128xf32>
    %cst_12 = arith.constant dense<0.000000e+00> : vector<128x128xf32>
    %23 = tpu.matmul %22, %5, %cst_12 {dimension_numbers = #tpu.dot_dimension_numbers<[1], [0], [0], [1], [0, 0, 1, 1], [], []>} : vector<128x128xf32>, vector<128x128xf32>, vector<128x128xf32> -> vector<128x128xf32>
    %c0_13 = arith.constant 0 : index
    %c0_14 = arith.constant 0 : index
    %c0_15 = arith.constant 0 : index
    %24 = vector.load %arg4[%c0_13, %c0_14, %c0_15] : memref<1x128x128xf32, #tpu.memory_space<vmem>>, vector<1x128x128xf32>
    %25 = vector.shape_cast %24 : vector<1x128x128xf32> to vector<128x128xf32>
    %26 = vector.shape_cast %23 : vector<128x128xf32> to vector<1x128x128xf32>
    tpu.vector_store %arg4[%c0_13, %c0_14, %c0_15], %26 {strides = array<i32>} : memref<1x128x128xf32, #tpu.memory_space<vmem>>, vector<1x128x128xf32>,
    return
  }
  func.func @transform_0(%arg0: i32) -> (i32, i32, i32) {
    %c0_i32 = arith.constant 0 : i32
    %c0_i32_0 = arith.constant 0 : i32
    %c0_i32_1 = arith.constant 0 : i32
    return %arg0, %c0_i32, %c0_i32_0 : i32, i32, i32
  }
  func.func @transform_1(%arg0: i32) -> (i32, i32, i32) {
    %c0_i32 = arith.constant 0 : i32
    %c0_i32_0 = arith.constant 0 : i32
    %c0_i32_1 = arith.constant 0 : i32
    return %arg0, %c0_i32, %c0_i32_0 : i32, i32, i32
  }
  func.func @transform_2(%arg0: i32) -> (i32, i32, i32) {
    %c0_i32 = arith.constant 0 : i32
    %c0_i32_0 = arith.constant 0 : i32
    %c0_i32_1 = arith.constant 0 : i32
    return %arg0, %c0_i32, %c0_i32_0 : i32, i32, i32
  }
  func.func @transform_3(%arg0: i32) -> (i32, i32, i32) {
    %c0_i32 = arith.constant 0 : i32
    %c0_i32_0 = arith.constant 0 : i32
    %c0_i32_1 = arith.constant 0 : i32
    return %arg0, %c0_i32, %c0_i32_0 : i32, i32, i32
  }
}

module attributes {stable_mosaic.version = 11 : i64} {
  func.func @_ffn_kernel(%arg0: i32, %arg1: i32, %arg2: memref<16x128xf32, #tpu.memory_space<vmem>>, %arg3: memref<128x128xf32, #tpu.memory_space<vmem>>, %arg4: memref<1x128xf32, #tpu.memory_space<vmem>>, %arg5: memref<128x128xf32, #tpu.memory_space<vmem>>, %arg6: memref<1x128xf32, #tpu.memory_space<vmem>>, %arg7: memref<16x128xf32, #tpu.memory_space<vmem>>, %arg8: memref<16x128xf32, #tpu.memory_space<vmem>>) attributes {dimension_semantics = [#tpu.dimension_semantics<parallel>, #tpu.dimension_semantics<arbitrary>], iteration_bounds = array<i64: 1, 1>, scalar_prefetch = 0 : i64, scratch_operands = 1 : i64, tpu.core_type = #tpu.core_type<tc>, window_params = [{transform_indices = @transform_0, window_bounds = array<i64: 16, 128>}, {transform_indices = @transform_1, window_bounds = array<i64: 128, 128>}, {transform_indices = @transform_2, window_bounds = array<i64: 1, 128>}, {transform_indices = @transform_3, window_bounds = array<i64: 128, 128>}, {pipeline_mode = #tpu.pipeline_mode<synchronous>, transform_indices = @transform_4, window_bounds = array<i64: 1, 128>}, {transform_indices = @transform_5, window_bounds = array<i64: 16, 128>}]} {
    %c0_i32 = arith.constant 0 : i32
    %0 = arith.cmpi eq, %arg1, %c0_i32 : i32
    %1 = arith.extui %0 : i1 to i32
    %c0_i32_0 = arith.constant 0 : i32
    %2 = arith.cmpi ne, %1, %c0_i32_0 : i32
    scf.if %2 {
      %cst_16 = arith.constant 0.000000e+00 : f32
      %19 = vector.broadcast %cst_16 : f32 to vector<16x128xf32>
      %c0_17 = arith.constant 0 : index
      %c0_18 = arith.constant 0 : index
      %20 = vector.load %arg8[%c0_17, %c0_18] : memref<16x128xf32, #tpu.memory_space<vmem>>, vector<16x128xf32>
      tpu.vector_store %arg8[%c0_17, %c0_18], %19 {strides = array<i32>} : memref<16x128xf32, #tpu.memory_space<vmem>>, vector<16x128xf32>,
    } else {
    }
    %c0 = arith.constant 0 : index
    %c0_1 = arith.constant 0 : index
    %3 = vector.load %arg2[%c0, %c0_1] : memref<16x128xf32, #tpu.memory_space<vmem>>, vector<16x128xf32>
    %c0_2 = arith.constant 0 : index
    %c0_3 = arith.constant 0 : index
    %4 = vector.load %arg3[%c0_2, %c0_3] : memref<128x128xf32, #tpu.memory_space<vmem>>, vector<128x128xf32>
    %cst = arith.constant dense<0.000000e+00> : vector<16x128xf32>
    %5 = tpu.matmul %3, %4, %cst {dimension_numbers = #tpu.dot_dimension_numbers<[1], [0], [0], [1], [0, 0, 1, 1], [], []>} : vector<16x128xf32>, vector<128x128xf32>, vector<16x128xf32> -> vector<16x128xf32>
    %c0_4 = arith.constant 0 : index
    %c0_5 = arith.constant 0 : index
    %6 = vector.load %arg4[%c0_4, %c0_5] : memref<1x128xf32, #tpu.memory_space<vmem>>, vector<1x128xf32>
    %7 = vector.broadcast %6 : vector<1x128xf32> to vector<16x128xf32>
    %8 = arith.addf %5, %7 : vector<16x128xf32>
    %cst_6 = arith.constant 0.000000e+00 : f32
    %9 = vector.broadcast %cst_6 : f32 to vector<16x128xf32>
    %10 = arith.maximumf %8, %9 : vector<16x128xf32>
    %c0_7 = arith.constant 0 : index
    %c0_8 = arith.constant 0 : index
    %11 = vector.load %arg8[%c0_7, %c0_8] : memref<16x128xf32, #tpu.memory_space<vmem>>, vector<16x128xf32>
    %c0_9 = arith.constant 0 : index
    %c0_10 = arith.constant 0 : index
    %12 = vector.load %arg5[%c0_9, %c0_10] : memref<128x128xf32, #tpu.memory_space<vmem>>, vector<128x128xf32>
    %cst_11 = arith.constant dense<0.000000e+00> : vector<16x128xf32>
    %13 = tpu.matmul %10, %12, %cst_11 {dimension_numbers = #tpu.dot_dimension_numbers<[1], [0], [0], [1], [0, 0, 1, 1], [], []>} : vector<16x128xf32>, vector<128x128xf32>, vector<16x128xf32> -> vector<16x128xf32>
    %14 = arith.addf %11, %13 : vector<16x128xf32>
    %c0_12 = arith.constant 0 : index
    %c0_13 = arith.constant 0 : index
    %15 = vector.load %arg8[%c0_12, %c0_13] : memref<16x128xf32, #tpu.memory_space<vmem>>, vector<16x128xf32>
    tpu.vector_store %arg8[%c0_12, %c0_13], %14 {strides = array<i32>} : memref<16x128xf32, #tpu.memory_space<vmem>>, vector<16x128xf32>,
    %c0_i32_14 = arith.constant 0 : i32
    %16 = arith.cmpi eq, %arg1, %c0_i32_14 : i32
    %17 = arith.extui %16 : i1 to i32
    %c0_i32_15 = arith.constant 0 : i32
    %18 = arith.cmpi ne, %17, %c0_i32_15 : i32
    scf.if %18 {
      %c0_16 = arith.constant 0 : index
      %c0_17 = arith.constant 0 : index
      %19 = vector.load %arg8[%c0_16, %c0_17] : memref<16x128xf32, #tpu.memory_space<vmem>>, vector<16x128xf32>
      %c0_18 = arith.constant 0 : index
      %c0_19 = arith.constant 0 : index
      %20 = vector.load %arg6[%c0_18, %c0_19] : memref<1x128xf32, #tpu.memory_space<vmem>>, vector<1x128xf32>
      %21 = vector.broadcast %20 : vector<1x128xf32> to vector<16x128xf32>
      %22 = arith.addf %19, %21 : vector<16x128xf32>
      %c0_20 = arith.constant 0 : index
      %c0_21 = arith.constant 0 : index
      %23 = vector.load %arg7[%c0_20, %c0_21] : memref<16x128xf32, #tpu.memory_space<vmem>>, vector<16x128xf32>
      tpu.vector_store %arg7[%c0_20, %c0_21], %22 {strides = array<i32>} : memref<16x128xf32, #tpu.memory_space<vmem>>, vector<16x128xf32>,
    } else {
    }
    return
  }
  func.func @transform_0(%arg0: i32, %arg1: i32) -> (i32, i32) {
    %c0_i32 = arith.constant 0 : i32
    %c0_i32_0 = arith.constant 0 : i32
    return %arg0, %c0_i32 : i32, i32
  }
  func.func @transform_1(%arg0: i32, %arg1: i32) -> (i32, i32) {
    %c0_i32 = arith.constant 0 : i32
    %c0_i32_0 = arith.constant 0 : i32
    return %c0_i32, %arg1 : i32, i32
  }
  func.func @transform_2(%arg0: i32, %arg1: i32) -> (i32, i32) {
    %c0_i32 = arith.constant 0 : i32
    %c0_i32_0 = arith.constant 0 : i32
    return %c0_i32, %arg1 : i32, i32
  }
  func.func @transform_3(%arg0: i32, %arg1: i32) -> (i32, i32) {
    %c0_i32 = arith.constant 0 : i32
    %c0_i32_0 = arith.constant 0 : i32
    return %arg1, %c0_i32 : i32, i32
  }
  func.func @transform_4(%arg0: i32, %arg1: i32) -> (i32, i32) {
    %c0_i32 = arith.constant 0 : i32
    %c0_i32_0 = arith.constant 0 : i32
    %c0_i32_1 = arith.constant 0 : i32
    return %c0_i32, %c0_i32_0 : i32, i32
  }
  func.func @transform_5(%arg0: i32, %arg1: i32) -> (i32, i32) {
    %c0_i32 = arith.constant 0 : i32
    %c0_i32_0 = arith.constant 0 : i32
    return %arg0, %c0_i32 : i32, i32
  }
}

</mosaic_0001>

<llo_original>
// kernel: transformer_encoder.14
$region0: #{transformer_encoder.14}
  #allocation0 [shape = 'u32[]', space=smem, size = 0x4, offset = 0x4, fixed_abs, tag = 'smem constant byte address 0x4 - core index']
  #allocation1 [shape = 'u32[72,128]{1,0:T(1,128)}', space=vmem, size = 0x9000, scoped, tag = 'internal scratch']
  %s0 = inlined_call_operand.vmem [shape: f32[16,128], index: 0, kind: input, shape index: {}]
  %s1 = inlined_call_operand.vmem [shape: f32[128,128], index: 1, kind: input, shape index: {}]
  %s2 = inlined_call_operand.vmem [shape: f32[1,128], index: 2, kind: input, shape index: {}]
  %s3 = inlined_call_operand.vmem [shape: f32[16,128], index: 3, kind: output, shape index: {}]
  %s4 = sld [smem:[#allocation0]]
  $region22: #{transformer_encoder.14} parent=0
    _
  %s6 = ssub.s32 1, %s4
  %s7 = scalar_select 0, %s6, %s4
  // Predicated region
  $region2: #{transformer_encoder.14} parent=0 // pred_check
    _
  $region3: #{transformer_encoder.14} parent=0 // pred_check_branch
    %9 = sbr.rel (0) target = $region5
  $region4: #{transformer_encoder.14} parent=0 // pred_region
    _
  $region5: #{transformer_encoder.14} parent=0 // pred_fallthru
    _
  // Predicated region
  $region6: #{transformer_encoder.14} parent=0 // pred_check
    _
  $region7: #{transformer_encoder.14} parent=0 // pred_check_branch
    %11 = sbr.rel (0) target = $region9
  $region8: #{transformer_encoder.14} parent=0 // pred_region
    _
  $region9: #{transformer_encoder.14} parent=0 // pred_fallthru
    _
  // Predicated region
  $region10: #{transformer_encoder.14} parent=0 // pred_check
    _
  $region11: #{transformer_encoder.14} parent=0 // pred_check_branch
    %13 = sbr.rel (0) target = $region13
  $region12: #{transformer_encoder.14} parent=0 // pred_region
    _
  $region13: #{transformer_encoder.14} parent=0 // pred_fallthru
    _
  %v14 = vld [vmem:[%s0] sm:$0xff]
  %v15 = vld [vmem:[%s0 + $0x8] sm:$0xff]
  %v16 = vld [vmem:[%s1] sm:$0xff]
  %v17 = vld [vmem:[%s1 + $0x8] sm:$0xff]
  %v18 = vld [vmem:[%s1 + $0x10] sm:$0xff]
  %v19 = vld [vmem:[%s1 + $0x18] sm:$0xff]
  %v20 = vld [vmem:[%s1 + $0x20] sm:$0xff]
  %v21 = vld [vmem:[%s1 + $0x28] sm:$0xff]
  %v22 = vld [vmem:[%s1 + $0x30] sm:$0xff]
  %v23 = vld [vmem:[%s1 + $0x38] sm:$0xff]
  %v24 = vld [vmem:[%s1 + $0x40] sm:$0xff]
  %v25 = vld [vmem:[%s1 + $0x48] sm:$0xff]
  %v26 = vld [vmem:[%s1 + $0x50] sm:$0xff]
  %v27 = vld [vmem:[%s1 + $0x58] sm:$0xff]
  %v28 = vld [vmem:[%s1 + $0x60] sm:$0xff]
  %v29 = vld [vmem:[%s1 + $0x68] sm:$0xff]
  %v30 = vld [vmem:[%s1 + $0x70] sm:$0xff]
  %v31 = vld [vmem:[%s1 + $0x78] sm:$0xff]
  %v32 = vld [vmem:[%s2] sm:$0x1]
  %v34 = vperm.slane %v32, 0
  %36 = vmatpush.msra.mxu0 %v31
  %37 = vmatpush.msra.mxu0 %v30
  %38 = vmatpush.msra.mxu0 %v29
  %39 = vmatpush.msra.mxu0 %v28
  %40 = vmatpush.msra.mxu0 %v27
  %41 = vmatpush.msra.mxu0 %v26
  %42 = vmatpush.msra.mxu0 %v25
  %43 = vmatpush.msra.mxu0 %v24
  %44 = vmatpush.msra.mxu0 %v23
  %45 = vmatpush.msra.mxu0 %v22
  %46 = vmatpush.msra.mxu0 %v21
  %47 = vmatpush.msra.mxu0 %v20
  %48 = vmatpush.msra.mxu0 %v19
  %49 = vmatpush.msra.mxu0 %v18
  %50 = vmatpush.msra.mxu0 %v17
  %51 = vmatpush.msra.mxu0 %v16
  %52 = vmatmul.f32.gmra.mxu0 %v14
  %v53 = vpop.f32.mrf.mxu0
  %v54 = vadd.f32 %v34, %v53
  %55 = vmatmul.f32.gmra.mxu0 %v15
  %v56 = vpop.f32.mrf.mxu0
  %v57 = vadd.f32 %v34, %v56
  %58 = vdwg.mxu0
  %59 = vst [vmem:[%s3] sm:$0xff] %v54
  %60 = vst [vmem:[%s3 + $0x8] sm:$0xff] %v57
  // Predicated region
  $region14: #{transformer_encoder.14} parent=0 // pred_check
    _
  $region15: #{transformer_encoder.14} parent=0 // pred_check_branch
    %62 = sbr.rel (0) target = $region17
  $region16: #{transformer_encoder.14} parent=0 // pred_region
    _
  $region17: #{transformer_encoder.14} parent=0 // pred_fallthru
    _
  // Predicated region
  $region18: #{transformer_encoder.14} parent=0 // pred_check
    _
  $region19: #{transformer_encoder.14} parent=0 // pred_check_branch
    %64 = sbr.rel (0) target = $region21
  $region20: #{transformer_encoder.14} parent=0 // pred_region
    _
  $region21: #{transformer_encoder.14} parent=0 // pred_fallthru
    _

// kernel: transformer_encoder.13
$region0: #{transformer_encoder.13}
  #allocation0 [shape = 'u32[]', space=smem, size = 0x4, offset = 0x4, fixed_abs, tag = 'smem constant byte address 0x4 - core index']
  #allocation1 [shape = 'u32[72,128]{1,0:T(1,128)}', space=vmem, size = 0x9000, scoped, tag = 'internal scratch']
  %s0 = inlined_call_operand.vmem [shape: f32[16,128], index: 0, kind: input, shape index: {}]
  %s1 = inlined_call_operand.vmem [shape: f32[16,128], index: 1, kind: input, shape index: {}]
  %s2 = inlined_call_operand.vmem [shape: f32[1,128], index: 2, kind: input, shape index: {}]
  %s3 = inlined_call_operand.vmem [shape: f32[1,128], index: 3, kind: input, shape index: {}]
  %s4 = inlined_call_operand.vmem [shape: f32[16,128], index: 4, kind: output, shape index: {}]
  %s5 = sld [smem:[#allocation0]]
  $region26: #{transformer_encoder.13} parent=0
    _
  %s7 = ssub.s32 1, %s5
  %s8 = scalar_select 0, %s7, %s5
  // Predicated region
  $region2: #{transformer_encoder.13} parent=0 // pred_check
    _
  $region3: #{transformer_encoder.13} parent=0 // pred_check_branch
    %10 = sbr.rel (0) target = $region5
  $region4: #{transformer_encoder.13} parent=0 // pred_region
    _
  $region5: #{transformer_encoder.13} parent=0 // pred_fallthru
    _
  // Predicated region
  $region6: #{transformer_encoder.13} parent=0 // pred_check
    _
  $region7: #{transformer_encoder.13} parent=0 // pred_check_branch
    %12 = sbr.rel (0) target = $region9
  $region8: #{transformer_encoder.13} parent=0 // pred_region
    _
  $region9: #{transformer_encoder.13} parent=0 // pred_fallthru
    _
  // Predicated region
  $region10: #{transformer_encoder.13} parent=0 // pred_check
    _
  $region11: #{transformer_encoder.13} parent=0 // pred_check_branch
    %14 = sbr.rel (0) target = $region13
  $region12: #{transformer_encoder.13} parent=0 // pred_region
    _
  $region13: #{transformer_encoder.13} parent=0 // pred_fallthru
    _
  // Predicated region
  $region14: #{transformer_encoder.13} parent=0 // pred_check
    _
  $region15: #{transformer_encoder.13} parent=0 // pred_check_branch
    %16 = sbr.rel (0) target = $region17
  $region16: #{transformer_encoder.13} parent=0 // pred_region
    _
  $region17: #{transformer_encoder.13} parent=0 // pred_fallthru
    _
  %v17 = vld [vmem:[%s0] sm:$0xff]
  %v18 = vld [vmem:[%s0 + $0x8] sm:$0xff]
  %v19 = vld [vmem:[%s1] sm:$0xff]
  %v20 = vld [vmem:[%s1 + $0x8] sm:$0xff]
  %v21 = vadd.f32 %v17, %v19
  %v22 = vadd.f32 %v18, %v20
  %23 = vadd.xlane.f32.xlu0 %v21
  %v24 = vpop.xlane.xlu0 %23
  %25 = vadd.xlane.f32.xlu0 %v22
  %v26 = vpop.xlane.xlu0 %25
  %v27 = vmul.f32 %v24, 0.03125
  %v28 = vmul.f32 %v26, 0.03125
  %v29 = vlaneseq
  %v30 = vand.u32 %v29, 127
  %vm31 = vcmp.lt.s32.totalorder %v30, 32
  %v32 = vsub.f32 %v21, %v27
  %v33 = vsub.f32 %v22, %v28
  %v34 = vsel %vm31, %v32, 0.0
  %v35 = vsel %vm31, %v33, 0.0
  %v36 = vmul.f32 %v34, %v34
  %v37 = vmul.f32 %v35, %v35
  %38 = vadd.xlane.f32.xlu0 %v36
  %v39 = vpop.xlane.xlu0 %38
  %40 = vadd.xlane.f32.xlu0 %v37
  %v41 = vpop.xlane.xlu0 %40
  %v42 = vmul.f32 %v39, 0.03125
  %v43 = vmul.f32 %v41, 0.03125
  %v44 = vadd.f32 %v42, 1e-05
  %v45 = vadd.f32 %v43, 1e-05
  %v46 = vrsqrt.pop %v44
  %v47 = vmul.f32 %v46, %v44
  %v48 = vmul.f32 %v47, %v46
  %v49 = vmul.f32 0.5, %v48
  %v50 = vsub.f32 1.5, %v49
  %v51 = vmul.f32 %v46, %v50
  %vm52 = vweird.f32 %v44
  %vm53 = vweird.f32 %v46
  %vm54 = vmor %vm52, %vm53
  %v55 = vsel %vm54, %v46, %v51
  %v56 = vrsqrt.pop %v45
  %v57 = vmul.f32 %v56, %v45
  %v58 = vmul.f32 %v57, %v56
  %v59 = vmul.f32 0.5, %v58
  %v60 = vsub.f32 1.5, %v59
  %v61 = vmul.f32 %v56, %v60
  %vm62 = vweird.f32 %v45
  %vm63 = vweird.f32 %v56
  %vm64 = vmor %vm62, %vm63
  %v65 = vsel %vm64, %v56, %v61
  %v66 = vmul.f32 %v34, %v55
  %v67 = vmul.f32 %v35, %v65
  %v68 = vld [vmem:[%s2] sm:$0x1]
  %v70 = vperm.slane %v68, 0
  %v72 = vmul.f32 %v66, %v70
  %v73 = vmul.f32 %v67, %v70
  %v74 = vld [vmem:[%s3] sm:$0x1]
  %v76 = vperm.slane %v74, 0
  %v78 = vadd.f32 %v72, %v76
  %v79 = vadd.f32 %v73, %v76
  %80 = vst [vmem:[%s4] sm:$0xff] %v78
  %81 = vst [vmem:[%s4 + $0x8] sm:$0xff] %v79
  // Predicated region
  $region18: #{transformer_encoder.13} parent=0 // pred_check
    _
  $region19: #{transformer_encoder.13} parent=0 // pred_check_branch
    %83 = sbr.rel (0) target = $region21
  $region20: #{transformer_encoder.13} parent=0 // pred_region
    _
  $region21: #{transformer_encoder.13} parent=0 // pred_fallthru
    _
  // Predicated region
  $region22: #{transformer_encoder.13} parent=0 // pred_check
    _
  $region23: #{transformer_encoder.13} parent=0 // pred_check_branch
    %85 = sbr.rel (0) target = $region25
  $region24: #{transformer_encoder.13} parent=0 // pred_region
    _
  $region25: #{transformer_encoder.13} parent=0 // pred_fallthru
    _

// kernel: transformer_encoder.15
$region0: #{transformer_encoder.15}
  #allocation0 [shape = 'u32[]', space=smem, size = 0x4, offset = 0x4, fixed_abs, tag = 'smem constant byte address 0x4 - core index']
  #allocation1 [shape = 'u32[72,128]{1,0:T(1,128)}', space=vmem, size = 0x9000, scoped, tag = 'internal scratch']
  %s0 = inlined_call_operand.vmem [shape: f32[8,128,128], index: 0, kind: input, shape index: {}]
  %s1 = inlined_call_operand.vmem [shape: f32[8,128,128], index: 1, kind: input, shape index: {}]
  %s2 = inlined_call_operand.vmem [shape: f32[8,128,128], index: 2, kind: input, shape index: {}]
  %s3 = inlined_call_operand.vmem [shape: f32[8,128,128], index: 3, kind: output, shape index: {}]
  %s4 = sld [smem:[#allocation0]]
  $region45: #{transformer_encoder.15} parent=0
    _
  %s6 = ssub.s32 1, %s4
  %s7 = scalar_select 0, %s6, %s4
  loop: start=0, step=1, limit=10
  $region2: #{transformer_encoder.15} parent=0 // loop_pre_header
    _
  $region3: #{transformer_encoder.15} parent=0 // loop_header
    %s9 = sphi 0, %s13
    %p10 = scmp.ge.s32.totalorder %s9, 10
    %s19 = sphi 0, %s21
    %s22 = sphi 0, %s19
    %s23 = sphi 0, %s22
    %s39 = sphi 0, %s23
    %s45 = sphi 0, %s47
    %s48 = sphi 0, %s45
    %s49 = sphi 0, %s48
    %s65 = sphi 0, %s49
    %s71 = sphi 0, %s73
    %s74 = sphi 0, %s71
    %s75 = sphi 0, %s74
    %s91 = sphi 0, %s75
    %s97 = sphi 0, %s99
    %s100 = sphi 0, %s97
    %s101 = sphi 0, %s100
    %s117 = sphi 0, %s101
  $region4: #{transformer_encoder.15} parent=0 // loop_header_branch
    %12 = sbr.rel (%p10) target = $region8
  $region5: #{transformer_encoder.15} parent=0 // loop_body
    %s14 = ssub.s32 %s9, 1
    %s15 = ssub.s32 %s9, 2
    %s16 = sadd.s32 %s9, 1
    %s17 = ssub.s32 %s9, %s16
    %p18 = scmp.eq.s32.totalorder %s17, 0
    %s20 = sadd.s32 %s19, 1
    %s21 = scalar_select %p18, %s19, %s20
    %p24 = pneg %p18
    %p25 = scmp.eq.s32.totalorder %s9, 7
    %p26 = por %p24, %p25
    %p27 = scmp.ne.s32.totalorder %s19, %s22
    %p28 = scmp.eq.s32.totalorder %s9, 0
    %p29 = por %p27, %p28
    %p30 = scmp.ne.s32.totalorder %s19, %s22
    %p31 = scmp.eq.s32.totalorder %s14, 7
    %p32 = por %p30, %p31
    %p33 = scmp.ne.s32.totalorder %s22, %s23
    %p34 = scmp.eq.s32.totalorder %s14, 0
    %p35 = por %p33, %p34
    %p36 = scmp.ne.s32.totalorder %s22, %s23
    %p37 = scmp.eq.s32.totalorder %s15, 7
    %p38 = por %p36, %p37
    %p40 = scmp.ne.s32.totalorder %s23, %s39
    %p41 = scmp.eq.s32.totalorder %s15, 0
    %p42 = por %p40, %p41
    %s43 = ssub.s32 %s9, %s16
    %p44 = scmp.eq.s32.totalorder %s43, 0
    %s46 = sadd.s32 %s45, 1
    %s47 = scalar_select %p44, %s45, %s46
    %p50 = pneg %p44
    %p51 = scmp.eq.s32.totalorder %s9, 7
    %p52 = por %p50, %p51
    %p53 = scmp.ne.s32.totalorder %s45, %s48
    %p54 = scmp.eq.s32.totalorder %s9, 0
    %p55 = por %p53, %p54
    %p56 = scmp.ne.s32.totalorder %s45, %s48
    %p57 = scmp.eq.s32.totalorder %s14, 7
    %p58 = por %p56, %p57
    %p59 = scmp.ne.s32.totalorder %s48, %s49
    %p60 = scmp.eq.s32.totalorder %s14, 0
    %p61 = por %p59, %p60
    %p62 = scmp.ne.s32.totalorder %s48, %s49
    %p63 = scmp.eq.s32.totalorder %s15, 7
    %p64 = por %p62, %p63
    %p66 = scmp.ne.s32.totalorder %s49, %s65
    %p67 = scmp.eq.s32.totalorder %s15, 0
    %p68 = por %p66, %p67
    %s69 = ssub.s32 %s9, %s16
    %p70 = scmp.eq.s32.totalorder %s69, 0
    %s72 = sadd.s32 %s71, 1
    %s73 = scalar_select %p70, %s71, %s72
    %p76 = pneg %p70
    %p77 = scmp.eq.s32.totalorder %s9, 7
    %p78 = por %p76, %p77
    %p79 = scmp.ne.s32.totalorder %s71, %s74
    %p80 = scmp.eq.s32.totalorder %s9, 0
    %p81 = por %p79, %p80
    %p82 = scmp.ne.s32.totalorder %s71, %s74
    %p83 = scmp.eq.s32.totalorder %s14, 7
    %p84 = por %p82, %p83
    %p85 = scmp.ne.s32.totalorder %s74, %s75
    %p86 = scmp.eq.s32.totalorder %s14, 0
    %p87 = por %p85, %p86
    %p88 = scmp.ne.s32.totalorder %s74, %s75
    %p89 = scmp.eq.s32.totalorder %s15, 7
    %p90 = por %p88, %p89
    %p92 = scmp.ne.s32.totalorder %s75, %s91
    %p93 = scmp.eq.s32.totalorder %s15, 0
    %p94 = por %p92, %p93
    %s95 = ssub.s32 %s9, %s16
    %p96 = scmp.eq.s32.totalorder %s95, 0
    %s98 = sadd.s32 %s97, 1
    %s99 = scalar_select %p96, %s97, %s98
    %p102 = pneg %p96
    %p103 = scmp.eq.s32.totalorder %s9, 7
    %p104 = por %p102, %p103
    %p105 = scmp.ne.s32.totalorder %s97, %s100
    %p106 = scmp.eq.s32.totalorder %s9, 0
    %p107 = por %p105, %p106
    %p108 = scmp.ne.s32.totalorder %s97, %s100
    %p109 = scmp.eq.s32.totalorder %s14, 7
    %p110 = por %p108, %p109
    %p111 = scmp.ne.s32.totalorder %s100, %s101
    %p112 = scmp.eq.s32.totalorder %s14, 0
    %p113 = por %p111, %p112
    %p114 = scmp.ne.s32.totalorder %s100, %s101
    %p115 = scmp.eq.s32.totalorder %s15, 7
    %p116 = por %p114, %p115
    %p118 = scmp.ne.s32.totalorder %s101, %s117
    %p119 = scmp.eq.s32.totalorder %s15, 0
    %p120 = por %p118, %p119
    %p121 = scmp.le.s32.totalorder 1, %s9
    %p122 = scmp.lt.s32.totalorder %s9, 9
    %p123 = pnand %p121, %p122
    %p124 = pneg %p123
    // Predicated region
    $region9: #{transformer_encoder.15} parent=5 // pred_check
      _
    $region10: #{transformer_encoder.15} parent=5 // pred_check_branch
      %126 = sbr.rel (%p123) target = $region12
    $region11: #{transformer_encoder.15} parent=5 // pred_region
      %s127 = ssub.s32 %s9, 1
    $region12: #{transformer_encoder.15} parent=5 // pred_fallthru
      _
    %p128 = scmp.lt.s32.totalorder %s9, 8
    // Predicated region
    $region13: #{transformer_encoder.15} parent=5 // pred_check
      %p129 = pneg %p128
    $region14: #{transformer_encoder.15} parent=5 // pred_check_branch
      %131 = sbr.rel (%p129) target = $region16
    $region15: #{transformer_encoder.15} parent=5 // pred_region
      // Predicated region
      $region17: #{transformer_encoder.15} parent=15 // pred_check
        %p132 = pneg %p29
      $region18: #{transformer_encoder.15} parent=15 // pred_check_branch
        %134 = sbr.rel (%p132) target = $region20
      $region19: #{transformer_encoder.15} parent=15 // pred_region
        %p135 = scmp.lt.s32.totalorder %s9, 7
        %s136 = scalar_select %p135, %s9, 7
        %s137 = smul.addr %s136, 16
        %s138 = smul.addr %s137, 8
        %s139 = scalar_lea.vmem %s0, %s138
      $region20: #{transformer_encoder.15} parent=15 // pred_fallthru
        _
      // Predicated region
      $region21: #{transformer_encoder.15} parent=15 // pred_check
        %p140 = pneg %p55
      $region22: #{transformer_encoder.15} parent=15 // pred_check_branch
        %142 = sbr.rel (%p140) target = $region24
      $region23: #{transformer_encoder.15} parent=15 // pred_region
        %p143 = scmp.lt.s32.totalorder %s9, 7
        %s144 = scalar_select %p143, %s9, 7
        %s145 = smul.addr %s144, 16
        %s146 = smul.addr %s145, 8
        %s147 = scalar_lea.vmem %s1, %s146
      $region24: #{transformer_encoder.15} parent=15 // pred_fallthru
        _
      // Predicated region
      $region25: #{transformer_encoder.15} parent=15 // pred_check
        %p148 = pneg %p81
      $region26: #{transformer_encoder.15} parent=15 // pred_check_branch
        %150 = sbr.rel (%p148) target = $region28
      $region27: #{transformer_encoder.15} parent=15 // pred_region
        %p151 = scmp.lt.s32.totalorder %s9, 7
        %s152 = scalar_select %p151, %s9, 7
        %s153 = smul.addr %s152, 16
        %s154 = smul.addr %s153, 8
        %s155 = scalar_lea.vmem %s2, %s154
      $region28: #{transformer_encoder.15} parent=15 // pred_fallthru
        _
    $region16: #{transformer_encoder.15} parent=5 // pred_fallthru
      _
    %p156 = scmp.le.s32.totalorder 1, %s9
    %p157 = scmp.lt.s32.totalorder %s9, 9
    %p158 = pnand %p156, %p157
    %p159 = pneg %p158
    // Predicated region
    $region29: #{transformer_encoder.15} parent=5 // pred_check
      _
    $region30: #{transformer_encoder.15} parent=5 // pred_check_branch
      %161 = sbr.rel (%p158) target = $region32
    $region31: #{transformer_encoder.15} parent=5 // pred_region
      %s162 = ssub.s32 %s9, 1
      %p163 = scmp.lt.s32.totalorder %s14, 7
      %s164 = scalar_select %p163, %s14, 7
      %s165 = smul.addr %s164, 16
      %s166 = smul.addr %s165, 8
      %s167 = scalar_lea.vmem %s0, %s166
      %p168 = pneg %p35
      %p169 = pneg %p32
      %p170 = scmp.lt.s32.totalorder %s14, 7
      %s171 = scalar_select %p170, %s14, 7
      %s172 = smul.addr %s171, 16
      %s173 = smul.addr %s172, 8
      %s174 = scalar_lea.vmem %s1, %s173
      %p175 = pneg %p61
      %p176 = pneg %p58
      %p177 = scmp.lt.s32.totalorder %s14, 7
      %s178 = scalar_select %p177, %s14, 7
      %s179 = smul.addr %s178, 16
      %s180 = smul.addr %s179, 8
      %s181 = scalar_lea.vmem %s2, %s180
      %p182 = pneg %p87
      %p183 = pneg %p84
      %p184 = pneg %p113
      %p185 = pneg %p110
      %p186 = scmp.lt.s32.totalorder %s14, 7
      %s187 = scalar_select %p186, %s14, 7
      %s188 = smul.addr %s187, 16
      %s189 = smul.addr %s188, 8
      %s190 = scalar_lea.vmem %s3, %s189
      %p191 = scmp.lt.s32.totalorder %s14, 7
      %s192 = scalar_select %p191, %s14, 7
      %s193 = smul.addr %s192, 16
      %s194 = smul.addr %s193, 8
      %s195 = scalar_lea.vmem %s0, %s194
      %p196 = scmp.lt.s32.totalorder %s14, 7
      %s197 = scalar_select %p196, %s14, 7
      %s198 = smul.addr %s197, 16
      %s199 = smul.addr %s198, 8
      %s200 = scalar_lea.vmem %s1, %s199
      %p201 = scmp.lt.s32.totalorder %s14, 7
      %s202 = scalar_select %p201, %s14, 7
      %s203 = smul.addr %s202, 16
      %s204 = smul.addr %s203, 8
      %s205 = scalar_lea.vmem %s2, %s204
      %p206 = scmp.lt.s32.totalorder %s14, 7
      %s207 = scalar_select %p206, %s14, 7
      %s208 = smul.addr %s207, 16
      %s209 = smul.addr %s208, 8
      %s210 = scalar_lea.vmem %s3, %s209
      %v211 = vld [vmem:[%s195] sm:$0xff]
      %v212 = vld [vmem:[%s195 + $0x8] sm:$0xff]
      %v213 = vld [vmem:[%s195 + $0x10] sm:$0xff]
      %v214 = vld [vmem:[%s195 + $0x18] sm:$0xff]
      %v215 = vld [vmem:[%s195 + $0x20] sm:$0xff]
      %v216 = vld [vmem:[%s195 + $0x28] sm:$0xff]
      %v217 = vld [vmem:[%s195 + $0x30] sm:$0xff]
      %v218 = vld [vmem:[%s195 + $0x38] sm:$0xff]
      %v219 = vld [vmem:[%s195 + $0x40] sm:$0xff]
      %v220 = vld [vmem:[%s195 + $0x48] sm:$0xff]
      %v221 = vld [vmem:[%s195 + $0x50] sm:$0xff]
      %v222 = vld [vmem:[%s195 + $0x58] sm:$0xff]
      %v223 = vld [vmem:[%s195 + $0x60] sm:$0xff]
      %v224 = vld [vmem:[%s195 + $0x68] sm:$0xff]
      %v225 = vld [vmem:[%s195 + $0x70] sm:$0xff]
      %v226 = vld [vmem:[%s195 + $0x78] sm:$0xff]
      %v227 = vld [vmem:[%s200] sm:$0xff]
      %v228 = vld [vmem:[%s200 + $0x8] sm:$0xff]
      %v229 = vld [vmem:[%s200 + $0x10] sm:$0xff]
      %v230 = vld [vmem:[%s200 + $0x18] sm:$0xff]
      %v231 = vld [vmem:[%s200 + $0x20] sm:$0xff]
      %v232 = vld [vmem:[%s200 + $0x28] sm:$0xff]
      %v233 = vld [vmem:[%s200 + $0x30] sm:$0xff]
      %v234 = vld [vmem:[%s200 + $0x38] sm:$0xff]
      %v235 = vld [vmem:[%s200 + $0x40] sm:$0xff]
      %v236 = vld [vmem:[%s200 + $0x48] sm:$0xff]
      %v237 = vld [vmem:[%s200 + $0x50] sm:$0xff]
      %v238 = vld [vmem:[%s200 + $0x58] sm:$0xff]
      %v239 = vld [vmem:[%s200 + $0x60] sm:$0xff]
      %v240 = vld [vmem:[%s200 + $0x68] sm:$0xff]
      %v241 = vld [vmem:[%s200 + $0x70] sm:$0xff]
      %v242 = vld [vmem:[%s200 + $0x78] sm:$0xff]
      %v243 = vld [vmem:[%s205] sm:$0xff]
      %v244 = vld [vmem:[%s205 + $0x8] sm:$0xff]
      %v245 = vld [vmem:[%s205 + $0x10] sm:$0xff]
      %v246 = vld [vmem:[%s205 + $0x18] sm:$0xff]
      %v247 = vld [vmem:[%s205 + $0x20] sm:$0xff]
      %v248 = vld [vmem:[%s205 + $0x28] sm:$0xff]
      %v249 = vld [vmem:[%s205 + $0x30] sm:$0xff]
      %v250 = vld [vmem:[%s205 + $0x38] sm:$0xff]
      %v251 = vld [vmem:[%s205 + $0x40] sm:$0xff]
      %v252 = vld [vmem:[%s205 + $0x48] sm:$0xff]
      %v253 = vld [vmem:[%s205 + $0x50] sm:$0xff]
      %v254 = vld [vmem:[%s205 + $0x58] sm:$0xff]
      %v255 = vld [vmem:[%s205 + $0x60] sm:$0xff]
      %v256 = vld [vmem:[%s205 + $0x68] sm:$0xff]
      %v257 = vld [vmem:[%s205 + $0x70] sm:$0xff]
      %v258 = vld [vmem:[%s205 + $0x78] sm:$0xff]
      %259 = vmatpush.xpose.msra.mxu0 %v242
      %260 = vmatpush.xpose.msra.mxu0 %v241
      %261 = vmatpush.xpose.msra.mxu0 %v240
      %262 = vmatpush.xpose.msra.mxu0 %v239
      %263 = vmatpush.xpose.msra.mxu0 %v238
      %264 = vmatpush.xpose.msra.mxu0 %v237
      %265 = vmatpush.xpose.msra.mxu0 %v236
      %266 = vmatpush.xpose.msra.mxu0 %v235
      %267 = vmatpush.xpose.msra.mxu0 %v234
      %268 = vmatpush.xpose.msra.mxu0 %v233
      %269 = vmatpush.xpose.msra.mxu0 %v232
      %270 = vmatpush.xpose.msra.mxu0 %v231
      %271 = vmatpush.xpose.msra.mxu0 %v230
      %272 = vmatpush.xpose.msra.mxu0 %v229
      %273 = vmatpush.xpose.msra.mxu0 %v228
      %274 = vmatpush.xpose.msra.mxu0 %v227
      %275 = vmatmul.f32.gmra.mxu0 %v211
      %v276 = vpop.f32.mrf.mxu0
      %v277 = vadd.f32 0.0, %v276
      %278 = vmatmul.f32.gmra.mxu0 %v212
      %v279 = vpop.f32.mrf.mxu0
      %v280 = vadd.f32 0.0, %v279
      %281 = vmatmul.f32.gmra.mxu0 %v213
      %v282 = vpop.f32.mrf.mxu0
      %v283 = vadd.f32 0.0, %v282
      %284 = vmatmul.f32.gmra.mxu0 %v214
      %v285 = vpop.f32.mrf.mxu0
      %v286 = vadd.f32 0.0, %v285
      %287 = vmatmul.f32.gmra.mxu0 %v215
      %v288 = vpop.f32.mrf.mxu0
      %v289 = vadd.f32 0.0, %v288
      %290 = vmatmul.f32.gmra.mxu0 %v216
      %v291 = vpop.f32.mrf.mxu0
      %v292 = vadd.f32 0.0, %v291
      %293 = vmatmul.f32.gmra.mxu0 %v217
      %v294 = vpop.f32.mrf.mxu0
      %v295 = vadd.f32 0.0, %v294
      %296 = vmatmul.f32.gmra.mxu0 %v218
      %v297 = vpop.f32.mrf.mxu0
      %v298 = vadd.f32 0.0, %v297
      %299 = vmatmul.f32.gmra.mxu0 %v219
      %v300 = vpop.f32.mrf.mxu0
      %v301 = vadd.f32 0.0, %v300
      %302 = vmatmul.f32.gmra.mxu0 %v220
      %v303 = vpop.f32.mrf.mxu0
      %v304 = vadd.f32 0.0, %v303
      %305 = vmatmul.f32.gmra.mxu0 %v221
      %v306 = vpop.f32.mrf.mxu0
      %v307 = vadd.f32 0.0, %v306
      %308 = vmatmul.f32.gmra.mxu0 %v222
      %v309 = vpop.f32.mrf.mxu0
      %v310 = vadd.f32 0.0, %v309
      %311 = vmatmul.f32.gmra.mxu0 %v223
      %v312 = vpop.f32.mrf.mxu0
      %v313 = vadd.f32 0.0, %v312
      %314 = vmatmul.f32.gmra.mxu0 %v224
      %v315 = vpop.f32.mrf.mxu0
      %v316 = vadd.f32 0.0, %v315
      %317 = vmatmul.f32.gmra.mxu0 %v225
      %v318 = vpop.f32.mrf.mxu0
      %v319 = vadd.f32 0.0, %v318
      %320 = vmatmul.f32.gmra.mxu0 %v226
      %v321 = vpop.f32.mrf.mxu0
      %v322 = vadd.f32 0.0, %v321
      %323 = vdwg.mxu0
      %v324 = vmul.f32 %v277, 0.35355338
      %v325 = vmul.f32 %v280, 0.35355338
      %v326 = vmul.f32 %v283, 0.35355338
      %v327 = vmul.f32 %v286, 0.35355338
      %v328 = vmul.f32 %v289, 0.35355338
      %v329 = vmul.f32 %v292, 0.35355338
      %v330 = vmul.f32 %v295, 0.35355338
      %v331 = vmul.f32 %v298, 0.35355338
      %v332 = vmul.f32 %v301, 0.35355338
      %v333 = vmul.f32 %v304, 0.35355338
      %v334 = vmul.f32 %v307, 0.35355338
      %v335 = vmul.f32 %v310, 0.35355338
      %v336 = vmul.f32 %v313, 0.35355338
      %v337 = vmul.f32 %v316, 0.35355338
      %v338 = vmul.f32 %v319, 0.35355338
      %v339 = vmul.f32 %v322, 0.35355338
      %v340 = vlaneseq
      %v341 = vand.u32 %v340, 127
      %vm342 = vcmp.lt.s32.totalorder %v341, 8
      %v343 = vsel %vm342, %v324, -1e+30
      %v344 = vsel %vm342, %v325, -1e+30
      %v345 = vsel %vm342, %v326, -1e+30
      %v346 = vsel %vm342, %v327, -1e+30
      %v347 = vsel %vm342, %v328, -1e+30
      %v348 = vsel %vm342, %v329, -1e+30
      %v349 = vsel %vm342, %v330, -1e+30
      %v350 = vsel %vm342, %v331, -1e+30
      %v351 = vsel %vm342, %v332, -1e+30
      %v352 = vsel %vm342, %v333, -1e+30
      %v353 = vsel %vm342, %v334, -1e+30
      %v354 = vsel %vm342, %v335, -1e+30
      %v355 = vsel %vm342, %v336, -1e+30
      %v356 = vsel %vm342, %v337, -1e+30
      %v357 = vsel %vm342, %v338, -1e+30
      %v358 = vsel %vm342, %v339, -1e+30
      %359 = vmax.xlane.f32.xlu0 %v343
      %v360 = vpop.xlane.xlu0 %359
      %361 = vmax.xlane.f32.xlu0 %v344
      %v362 = vpop.xlane.xlu0 %361
      %363 = vmax.xlane.f32.xlu0 %v345
      %v364 = vpop.xlane.xlu0 %363
      %365 = vmax.xlane.f32.xlu0 %v346
      %v366 = vpop.xlane.xlu0 %365
      %367 = vmax.xlane.f32.xlu0 %v347
      %v368 = vpop.xlane.xlu0 %367
      %369 = vmax.xlane.f32.xlu0 %v348
      %v370 = vpop.xlane.xlu0 %369
      %371 = vmax.xlane.f32.xlu0 %v349
      %v372 = vpop.xlane.xlu0 %371
      %373 = vmax.xlane.f32.xlu0 %v350
      %v374 = vpop.xlane.xlu0 %373
      %375 = vmax.xlane.f32.xlu0 %v351
      %v376 = vpop.xlane.xlu0 %375
      %377 = vmax.xlane.f32.xlu0 %v352
      %v378 = vpop.xlane.xlu0 %377
      %379 = vmax.xlane.f32.xlu0 %v353
      %v380 = vpop.xlane.xlu0 %379
      %381 = vmax.xlane.f32.xlu0 %v354
      %v382 = vpop.xlane.xlu0 %381
      %383 = vmax.xlane.f32.xlu0 %v355
      %v384 = vpop.xlane.xlu0 %383
      %385 = vmax.xlane.f32.xlu0 %v356
      %v386 = vpop.xlane.xlu0 %385
      %387 = vmax.xlane.f32.xlu0 %v357
      %v388 = vpop.xlane.xlu0 %387
      %389 = vmax.xlane.f32.xlu0 %v358
      %v390 = vpop.xlane.xlu0 %389
      %v391 = vsub.f32 %v343, %v360
      %v392 = vsub.f32 %v344, %v362
      %v393 = vsub.f32 %v345, %v364
      %v394 = vsub.f32 %v346, %v366
      %v395 = vsub.f32 %v347, %v368
      %v396 = vsub.f32 %v348, %v370
      %v397 = vsub.f32 %v349, %v372
      %v398 = vsub.f32 %v350, %v374
      %v399 = vsub.f32 %v351, %v376
      %v400 = vsub.f32 %v352, %v378
      %v401 = vsub.f32 %v353, %v380
      %v402 = vsub.f32 %v354, %v382
      %v403 = vsub.f32 %v355, %v384
      %v404 = vsub.f32 %v356, %v386
      %v405 = vsub.f32 %v357, %v388
      %v406 = vsub.f32 %v358, %v390
      %v407 = vmul.f32 %v391, 1.442695
      %v408 = vpow.pop %v407
      %v409 = vmul.f32 %v392, 1.442695
      %v410 = vpow.pop %v409
      %v411 = vmul.f32 %v393, 1.442695
      %v412 = vpow.pop %v411
      %v413 = vmul.f32 %v394, 1.442695
      %v414 = vpow.pop %v413
      %v415 = vmul.f32 %v395, 1.442695
      %v416 = vpow.pop %v415
      %v417 = vmul.f32 %v396, 1.442695
      %v418 = vpow.pop %v417
      %v419 = vmul.f32 %v397, 1.442695
      %v420 = vpow.pop %v419
      %v421 = vmul.f32 %v398, 1.442695
      %v422 = vpow.pop %v421
      %v423 = vmul.f32 %v399, 1.442695
      %v424 = vpow.pop %v423
      %v425 = vmul.f32 %v400, 1.442695
      %v426 = vpow.pop %v425
      %v427 = vmul.f32 %v401, 1.442695
      %v428 = vpow.pop %v427
      %v429 = vmul.f32 %v402, 1.442695
      %v430 = vpow.pop %v429
      %v431 = vmul.f32 %v403, 1.442695
      %v432 = vpow.pop %v431
      %v433 = vmul.f32 %v404, 1.442695
      %v434 = vpow.pop %v433
      %v435 = vmul.f32 %v405, 1.442695
      %v436 = vpow.pop %v435
      %v437 = vmul.f32 %v406, 1.442695
      %v438 = vpow.pop %v437
      %439 = vadd.xlane.f32.xlu0 %v408
      %v440 = vpop.xlane.xlu0 %439
      %441 = vadd.xlane.f32.xlu0 %v410
      %v442 = vpop.xlane.xlu0 %441
      %443 = vadd.xlane.f32.xlu0 %v412
      %v444 = vpop.xlane.xlu0 %443
      %445 = vadd.xlane.f32.xlu0 %v414
      %v446 = vpop.xlane.xlu0 %445
      %447 = vadd.xlane.f32.xlu0 %v416
      %v448 = vpop.xlane.xlu0 %447
      %449 = vadd.xlane.f32.xlu0 %v418
      %v450 = vpop.xlane.xlu0 %449
      %451 = vadd.xlane.f32.xlu0 %v420
      %v452 = vpop.xlane.xlu0 %451
      %453 = vadd.xlane.f32.xlu0 %v422
      %v454 = vpop.xlane.xlu0 %453
      %455 = vadd.xlane.f32.xlu0 %v424
      %v456 = vpop.xlane.xlu0 %455
      %457 = vadd.xlane.f32.xlu0 %v426
      %v458 = vpop.xlane.xlu0 %457
      %459 = vadd.xlane.f32.xlu0 %v428
      %v460 = vpop.xlane.xlu0 %459
      %461 = vadd.xlane.f32.xlu0 %v430
      %v462 = vpop.xlane.xlu0 %461
      %463 = vadd.xlane.f32.xlu0 %v432
      %v464 = vpop.xlane.xlu0 %463
      %465 = vadd.xlane.f32.xlu0 %v434
      %v466 = vpop.xlane.xlu0 %465
      %467 = vadd.xlane.f32.xlu0 %v436
      %v468 = vpop.xlane.xlu0 %467
      %469 = vadd.xlane.f32.xlu0 %v438
      %v470 = vpop.xlane.xlu0 %469
      %v471 = vrcp.pop %v440
      %v472 = vmul.f32 %v440, %v471
      %v473 = vsub.f32 1.0, %v472
      %v474 = vmul.f32 %v471, %v473
      %v475 = vadd.f32 %v471, %v474
      %vm476 = vweird.f32 %v440
      %vm477 = vweird.f32 %v471
      %vm478 = vmor %vm476, %vm477
      %v479 = vsel %vm478, %v471, %v475
      %v480 = vand.u32 2147483647, %v440
      %vm481 = vcmp.eq.f32.partialorder %v480, 8.507059e+37
      %v482 = vand.u32 %v440, 2147483648
      %v483 = vor.u32 1.1754944e-38, %v482
      %v484 = vsel %vm481, %v483, %v479
      %v485 = vmul.f32 %v408, %v484
      %v486 = vrcp.pop %v442
      %v487 = vmul.f32 %v442, %v486
      %v488 = vsub.f32 1.0, %v487
      %v489 = vmul.f32 %v486, %v488
      %v490 = vadd.f32 %v486, %v489
      %vm491 = vweird.f32 %v442
      %vm492 = vweird.f32 %v486
      %vm493 = vmor %vm491, %vm492
      %v494 = vsel %vm493, %v486, %v490
      %v495 = vand.u32 2147483647, %v442
      %vm496 = vcmp.eq.f32.partialorder %v495, 8.507059e+37
      %v497 = vand.u32 %v442, 2147483648
      %v498 = vor.u32 1.1754944e-38, %v497
      %v499 = vsel %vm496, %v498, %v494
      %v500 = vmul.f32 %v410, %v499
      %v501 = vrcp.pop %v444
      %v502 = vmul.f32 %v444, %v501
      %v503 = vsub.f32 1.0, %v502
      %v504 = vmul.f32 %v501, %v503
      %v505 = vadd.f32 %v501, %v504
      %vm506 = vweird.f32 %v444
      %vm507 = vweird.f32 %v501
      %vm508 = vmor %vm506, %vm507
      %v509 = vsel %vm508, %v501, %v505
      %v510 = vand.u32 2147483647, %v444
      %vm511 = vcmp.eq.f32.partialorder %v510, 8.507059e+37
      %v512 = vand.u32 %v444, 2147483648
      %v513 = vor.u32 1.1754944e-38, %v512
      %v514 = vsel %vm511, %v513, %v509
      %v515 = vmul.f32 %v412, %v514
      %v516 = vrcp.pop %v446
      %v517 = vmul.f32 %v446, %v516
      %v518 = vsub.f32 1.0, %v517
      %v519 = vmul.f32 %v516, %v518
      %v520 = vadd.f32 %v516, %v519
      %vm521 = vweird.f32 %v446
      %vm522 = vweird.f32 %v516
      %vm523 = vmor %vm521, %vm522
      %v524 = vsel %vm523, %v516, %v520
      %v525 = vand.u32 2147483647, %v446
      %vm526 = vcmp.eq.f32.partialorder %v525, 8.507059e+37
      %v527 = vand.u32 %v446, 2147483648
      %v528 = vor.u32 1.1754944e-38, %v527
      %v529 = vsel %vm526, %v528, %v524
      %v530 = vmul.f32 %v414, %v529
      %v531 = vrcp.pop %v448
      %v532 = vmul.f32 %v448, %v531
      %v533 = vsub.f32 1.0, %v532
      %v534 = vmul.f32 %v531, %v533
      %v535 = vadd.f32 %v531, %v534
      %vm536 = vweird.f32 %v448
      %vm537 = vweird.f32 %v531
      %vm538 = vmor %vm536, %vm537
      %v539 = vsel %vm538, %v531, %v535
      %v540 = vand.u32 2147483647, %v448
      %vm541 = vcmp.eq.f32.partialorder %v540, 8.507059e+37
      %v542 = vand.u32 %v448, 2147483648
      %v543 = vor.u32 1.1754944e-38, %v542
      %v544 = vsel %vm541, %v543, %v539
      %v545 = vmul.f32 %v416, %v544
      %v546 = vrcp.pop %v450
      %v547 = vmul.f32 %v450, %v546
      %v548 = vsub.f32 1.0, %v547
      %v549 = vmul.f32 %v546, %v548
      %v550 = vadd.f32 %v546, %v549
      %vm551 = vweird.f32 %v450
      %vm552 = vweird.f32 %v546
      %vm553 = vmor %vm551, %vm552
      %v554 = vsel %vm553, %v546, %v550
      %v555 = vand.u32 2147483647, %v450
      %vm556 = vcmp.eq.f32.partialorder %v555, 8.507059e+37
      %v557 = vand.u32 %v450, 2147483648
      %v558 = vor.u32 1.1754944e-38, %v557
      %v559 = vsel %vm556, %v558, %v554
      %v560 = vmul.f32 %v418, %v559
      %v561 = vrcp.pop %v452
      %v562 = vmul.f32 %v452, %v561
      %v563 = vsub.f32 1.0, %v562
      %v564 = vmul.f32 %v561, %v563
      %v565 = vadd.f32 %v561, %v564
      %vm566 = vweird.f32 %v452
      %vm567 = vweird.f32 %v561
      %vm568 = vmor %vm566, %vm567
      %v569 = vsel %vm568, %v561, %v565
      %v570 = vand.u32 2147483647, %v452
      %vm571 = vcmp.eq.f32.partialorder %v570, 8.507059e+37
      %v572 = vand.u32 %v452, 2147483648
      %v573 = vor.u32 1.1754944e-38, %v572
      %v574 = vsel %vm571, %v573, %v569
      %v575 = vmul.f32 %v420, %v574
      %v576 = vrcp.pop %v454
      %v577 = vmul.f32 %v454, %v576
      %v578 = vsub.f32 1.0, %v577
      %v579 = vmul.f32 %v576, %v578
      %v580 = vadd.f32 %v576, %v579
      %vm581 = vweird.f32 %v454
      %vm582 = vweird.f32 %v576
      %vm583 = vmor %vm581, %vm582
      %v584 = vsel %vm583, %v576, %v580
      %v585 = vand.u32 2147483647, %v454
      %vm586 = vcmp.eq.f32.partialorder %v585, 8.507059e+37
      %v587 = vand.u32 %v454, 2147483648
      %v588 = vor.u32 1.1754944e-38, %v587
      %v589 = vsel %vm586, %v588, %v584
      %v590 = vmul.f32 %v422, %v589
      %v591 = vrcp.pop %v456
      %v592 = vmul.f32 %v456, %v591
      %v593 = vsub.f32 1.0, %v592
      %v594 = vmul.f32 %v591, %v593
      %v595 = vadd.f32 %v591, %v594
      %vm596 = vweird.f32 %v456
      %vm597 = vweird.f32 %v591
      %vm598 = vmor %vm596, %vm597
      %v599 = vsel %vm598, %v591, %v595
      %v600 = vand.u32 2147483647, %v456
      %vm601 = vcmp.eq.f32.partialorder %v600, 8.507059e+37
      %v602 = vand.u32 %v456, 2147483648
      %v603 = vor.u32 1.1754944e-38, %v602
      %v604 = vsel %vm601, %v603, %v599
      %v605 = vmul.f32 %v424, %v604
      %v606 = vrcp.pop %v458
      %v607 = vmul.f32 %v458, %v606
      %v608 = vsub.f32 1.0, %v607
      %v609 = vmul.f32 %v606, %v608
      %v610 = vadd.f32 %v606, %v609
      %vm611 = vweird.f32 %v458
      %vm612 = vweird.f32 %v606
      %vm613 = vmor %vm611, %vm612
      %v614 = vsel %vm613, %v606, %v610
      %v615 = vand.u32 2147483647, %v458
      %vm616 = vcmp.eq.f32.partialorder %v615, 8.507059e+37
      %v617 = vand.u32 %v458, 2147483648
      %v618 = vor.u32 1.1754944e-38, %v617
      %v619 = vsel %vm616, %v618, %v614
      %v620 = vmul.f32 %v426, %v619
      %v621 = vrcp.pop %v460
      %v622 = vmul.f32 %v460, %v621
      %v623 = vsub.f32 1.0, %v622
      %v624 = vmul.f32 %v621, %v623
      %v625 = vadd.f32 %v621, %v624
      %vm626 = vweird.f32 %v460
      %vm627 = vweird.f32 %v621
      %vm628 = vmor %vm626, %vm627
      %v629 = vsel %vm628, %v621, %v625
      %v630 = vand.u32 2147483647, %v460
      %vm631 = vcmp.eq.f32.partialorder %v630, 8.507059e+37
      %v632 = vand.u32 %v460, 2147483648
      %v633 = vor.u32 1.1754944e-38, %v632
      %v634 = vsel %vm631, %v633, %v629
      %v635 = vmul.f32 %v428, %v634
      %v636 = vrcp.pop %v462
      %v637 = vmul.f32 %v462, %v636
      %v638 = vsub.f32 1.0, %v637
      %v639 = vmul.f32 %v636, %v638
      %v640 = vadd.f32 %v636, %v639
      %vm641 = vweird.f32 %v462
      %vm642 = vweird.f32 %v636
      %vm643 = vmor %vm641, %vm642
      %v644 = vsel %vm643, %v636, %v640
      %v645 = vand.u32 2147483647, %v462
      %vm646 = vcmp.eq.f32.partialorder %v645, 8.507059e+37
      %v647 = vand.u32 %v462, 2147483648
      %v648 = vor.u32 1.1754944e-38, %v647
      %v649 = vsel %vm646, %v648, %v644
      %v650 = vmul.f32 %v430, %v649
      %v651 = vrcp.pop %v464
      %v652 = vmul.f32 %v464, %v651
      %v653 = vsub.f32 1.0, %v652
      %v654 = vmul.f32 %v651, %v653
      %v655 = vadd.f32 %v651, %v654
      %vm656 = vweird.f32 %v464
      %vm657 = vweird.f32 %v651
      %vm658 = vmor %vm656, %vm657
      %v659 = vsel %vm658, %v651, %v655
      %v660 = vand.u32 2147483647, %v464
      %vm661 = vcmp.eq.f32.partialorder %v660, 8.507059e+37
      %v662 = vand.u32 %v464, 2147483648
      %v663 = vor.u32 1.1754944e-38, %v662
      %v664 = vsel %vm661, %v663, %v659
      %v665 = vmul.f32 %v432, %v664
      %v666 = vrcp.pop %v466
      %v667 = vmul.f32 %v466, %v666
      %v668 = vsub.f32 1.0, %v667
      %v669 = vmul.f32 %v666, %v668
      %v670 = vadd.f32 %v666, %v669
      %vm671 = vweird.f32 %v466
      %vm672 = vweird.f32 %v666
      %vm673 = vmor %vm671, %vm672
      %v674 = vsel %vm673, %v666, %v670
      %v675 = vand.u32 2147483647, %v466
      %vm676 = vcmp.eq.f32.partialorder %v675, 8.507059e+37
      %v677 = vand.u32 %v466, 2147483648
      %v678 = vor.u32 1.1754944e-38, %v677
      %v679 = vsel %vm676, %v678, %v674
      %v680 = vmul.f32 %v434, %v679
      %v681 = vrcp.pop %v468
      %v682 = vmul.f32 %v468, %v681
      %v683 = vsub.f32 1.0, %v682
      %v684 = vmul.f32 %v681, %v683
      %v685 = vadd.f32 %v681, %v684
      %vm686 = vweird.f32 %v468
      %vm687 = vweird.f32 %v681
      %vm688 = vmor %vm686, %vm687
      %v689 = vsel %vm688, %v681, %v685
      %v690 = vand.u32 2147483647, %v468
      %vm691 = vcmp.eq.f32.partialorder %v690, 8.507059e+37
      %v692 = vand.u32 %v468, 2147483648
      %v693 = vor.u32 1.1754944e-38, %v692
      %v694 = vsel %vm691, %v693, %v689
      %v695 = vmul.f32 %v436, %v694
      %v696 = vrcp.pop %v470
      %v697 = vmul.f32 %v470, %v696
      %v698 = vsub.f32 1.0, %v697
      %v699 = vmul.f32 %v696, %v698
      %v700 = vadd.f32 %v696, %v699
      %vm701 = vweird.f32 %v470
      %vm702 = vweird.f32 %v696
      %vm703 = vmor %vm701, %vm702
      %v704 = vsel %vm703, %v696, %v700
      %v705 = vand.u32 2147483647, %v470
      %vm706 = vcmp.eq.f32.partialorder %v705, 8.507059e+37
      %v707 = vand.u32 %v470, 2147483648
      %v708 = vor.u32 1.1754944e-38, %v707
      %v709 = vsel %vm706, %v708, %v704
      %v710 = vmul.f32 %v438, %v709
      %711 = vmatpush.msra.mxu0 %v258
      %712 = vmatpush.msra.mxu0 %v257
      %713 = vmatpush.msra.mxu0 %v256
      %714 = vmatpush.msra.mxu0 %v255
      %715 = vmatpush.msra.mxu0 %v254
      %716 = vmatpush.msra.mxu0 %v253
      %717 = vmatpush.msra.mxu0 %v252
      %718 = vmatpush.msra.mxu0 %v251
      %719 = vmatpush.msra.mxu0 %v250
      %720 = vmatpush.msra.mxu0 %v249
      %721 = vmatpush.msra.mxu0 %v248
      %722 = vmatpush.msra.mxu0 %v247
      %723 = vmatpush.msra.mxu0 %v246
      %724 = vmatpush.msra.mxu0 %v245
      %725 = vmatpush.msra.mxu0 %v244
      %726 = vmatpush.msra.mxu0 %v243
      %727 = vmatmul.f32.gmra.mxu0 %v485
      %v728 = vpop.f32.mrf.mxu0
      %v729 = vadd.f32 0.0, %v728
      %730 = vmatmul.f32.gmra.mxu0 %v500
      %v731 = vpop.f32.mrf.mxu0
      %v732 = vadd.f32 0.0, %v731
      %733 = vmatmul.f32.gmra.mxu0 %v515
      %v734 = vpop.f32.mrf.mxu0
      %v735 = vadd.f32 0.0, %v734
      %736 = vmatmul.f32.gmra.mxu0 %v530
      %v737 = vpop.f32.mrf.mxu0
      %v738 = vadd.f32 0.0, %v737
      %739 = vmatmul.f32.gmra.mxu0 %v545
      %v740 = vpop.f32.mrf.mxu0
      %v741 = vadd.f32 0.0, %v740
      %742 = vmatmul.f32.gmra.mxu0 %v560
      %v743 = vpop.f32.mrf.mxu0
      %v744 = vadd.f32 0.0, %v743
      %745 = vmatmul.f32.gmra.mxu0 %v575
      %v746 = vpop.f32.mrf.mxu0
      %v747 = vadd.f32 0.0, %v746
      %748 = vmatmul.f32.gmra.mxu0 %v590
      %v749 = vpop.f32.mrf.mxu0
      %v750 = vadd.f32 0.0, %v749
      %751 = vmatmul.f32.gmra.mxu0 %v605
      %v752 = vpop.f32.mrf.mxu0
      %v753 = vadd.f32 0.0, %v752
      %754 = vmatmul.f32.gmra.mxu0 %v620
      %v755 = vpop.f32.mrf.mxu0
      %v756 = vadd.f32 0.0, %v755
      %757 = vmatmul.f32.gmra.mxu0 %v635
      %v758 = vpop.f32.mrf.mxu0
      %v759 = vadd.f32 0.0, %v758
      %760 = vmatmul.f32.gmra.mxu0 %v650
      %v761 = vpop.f32.mrf.mxu0
      %v762 = vadd.f32 0.0, %v761
      %763 = vmatmul.f32.gmra.mxu0 %v665
      %v764 = vpop.f32.mrf.mxu0
      %v765 = vadd.f32 0.0, %v764
      %766 = vmatmul.f32.gmra.mxu0 %v680
      %v767 = vpop.f32.mrf.mxu0
      %v768 = vadd.f32 0.0, %v767
      %769 = vmatmul.f32.gmra.mxu0 %v695
      %v770 = vpop.f32.mrf.mxu0
      %v771 = vadd.f32 0.0, %v770
      %772 = vmatmul.f32.gmra.mxu0 %v710
      %v773 = vpop.f32.mrf.mxu0
      %v774 = vadd.f32 0.0, %v773
      %775 = vdwg.mxu0
      %776 = vst [vmem:[%s210] sm:$0xff] %v729
      %777 = vst [vmem:[%s210 + $0x8] sm:$0xff] %v732
      %778 = vst [vmem:[%s210 + $0x10] sm:$0xff] %v735
      %779 = vst [vmem:[%s210 + $0x18] sm:$0xff] %v738
      %780 = vst [vmem:[%s210 + $0x20] sm:$0xff] %v741
      %781 = vst [vmem:[%s210 + $0x28] sm:$0xff] %v744
      %782 = vst [vmem:[%s210 + $0x30] sm:$0xff] %v747
      %783 = vst [vmem:[%s210 + $0x38] sm:$0xff] %v750
      %784 = vst [vmem:[%s210 + $0x40] sm:$0xff] %v753
      %785 = vst [vmem:[%s210 + $0x48] sm:$0xff] %v756
      %786 = vst [vmem:[%s210 + $0x50] sm:$0xff] %v759
      %787 = vst [vmem:[%s210 + $0x58] sm:$0xff] %v762
      %788 = vst [vmem:[%s210 + $0x60] sm:$0xff] %v765
      %789 = vst [vmem:[%s210 + $0x68] sm:$0xff] %v768
      %790 = vst [vmem:[%s210 + $0x70] sm:$0xff] %v771
      %791 = vst [vmem:[%s210 + $0x78] sm:$0xff] %v774
      %p792 = scmp.lt.s32.totalorder %s14, 7
      %s793 = scalar_select %p792, %s14, 7
      %s794 = smul.addr %s793, 16
      %s795 = smul.addr %s794, 8
      %s796 = scalar_lea.vmem %s3, %s795
      // Predicated region
      $region33: #{transformer_encoder.15} parent=31 // pred_check
        %p797 = pneg %p110
      $region34: #{transformer_encoder.15} parent=31 // pred_check_branch
        %799 = sbr.rel (%p797) target = $region36
      $region35: #{transformer_encoder.15} parent=31 // pred_region
        _
      $region36: #{transformer_encoder.15} parent=31 // pred_fallthru
        _
    $region32: #{transformer_encoder.15} parent=5 // pred_fallthru
      _
    %p800 = scmp.le.s32.totalorder 2, %s9
    // Predicated region
    $region37: #{transformer_encoder.15} parent=5 // pred_check
      %p801 = pneg %p800
    $region38: #{transformer_encoder.15} parent=5 // pred_check_branch
      %803 = sbr.rel (%p801) target = $region40
    $region39: #{transformer_encoder.15} parent=5 // pred_region
      %s804 = ssub.s32 %s9, 2
      // Predicated region
      $region41: #{transformer_encoder.15} parent=39 // pred_check
        %p805 = pneg %p116
      $region42: #{transformer_encoder.15} parent=39 // pred_check_branch
        %807 = sbr.rel (%p805) target = $region44
      $region43: #{transformer_encoder.15} parent=39 // pred_region
        %p808 = scmp.lt.s32.totalorder %s15, 7
        %s809 = scalar_select %p808, %s15, 7
        %s810 = smul.addr %s809, 16
        %s811 = smul.addr %s810, 8
        %s812 = scalar_lea.vmem %s3, %s811
      $region44: #{transformer_encoder.15} parent=39 // pred_fallthru
        _
    $region40: #{transformer_encoder.15} parent=5 // pred_fallthru
      _
  $region6: #{transformer_encoder.15} parent=0 // loop_footer
    %s13 = sadd.s32 1, %s9
  $region7: #{transformer_encoder.15} parent=0 // loop_footer_branch
    %8 = sbr.rel target = $region3
  $region8: #{transformer_encoder.15} parent=0 // loop_exit
    _

// kernel: transformer_encoder.18
$region0: #{transformer_encoder.18}
  #allocation0 [shape = 'u32[]', space=smem, size = 0x4, offset = 0x4, fixed_abs, tag = 'smem constant byte address 0x4 - core index']
  #allocation1 [shape = 'u32[72,128]{1,0:T(1,128)}', space=vmem, size = 0x9000, scoped, tag = 'internal scratch']
  #allocation2 [shape = 'f32[16,128]{1,0:T(8,128)}', space=vmem, size = 0x2000, scoped, tag = 'scratch operand']
  %s0 = inlined_call_operand.vmem [shape: f32[16,128], index: 0, kind: input, shape index: {}]
  %s1 = inlined_call_operand.vmem [shape: f32[128,128], index: 1, kind: input, shape index: {}]
  %s2 = inlined_call_operand.vmem [shape: f32[1,128], index: 2, kind: input, shape index: {}]
  %s3 = inlined_call_operand.vmem [shape: f32[128,128], index: 3, kind: input, shape index: {}]
  %s4 = inlined_call_operand.vmem [shape: f32[1,128], index: 4, kind: input, shape index: {}]
  %s5 = inlined_call_operand.vmem [shape: f32[16,128], index: 5, kind: output, shape index: {}]
  %s6 = sld [smem:[#allocation0]]
  $region38: #{transformer_encoder.18} parent=0
    _
  %s8 = ssub.s32 1, %s6
  %s9 = scalar_select 0, %s8, %s6
  // Predicated region
  $region2: #{transformer_encoder.18} parent=0 // pred_check
    _
  $region3: #{transformer_encoder.18} parent=0 // pred_check_branch
    %11 = sbr.rel (0) target = $region5
  $region4: #{transformer_encoder.18} parent=0 // pred_region
    _
  $region5: #{transformer_encoder.18} parent=0 // pred_fallthru
    _
  // Predicated region
  $region6: #{transformer_encoder.18} parent=0 // pred_check
    _
  $region7: #{transformer_encoder.18} parent=0 // pred_check_branch
    %13 = sbr.rel (0) target = $region9
  $region8: #{transformer_encoder.18} parent=0 // pred_region
    _
  $region9: #{transformer_encoder.18} parent=0 // pred_fallthru
    _
  // Predicated region
  $region10: #{transformer_encoder.18} parent=0 // pred_check
    _
  $region11: #{transformer_encoder.18} parent=0 // pred_check_branch
    %15 = sbr.rel (0) target = $region13
  $region12: #{transformer_encoder.18} parent=0 // pred_region
    _
  $region13: #{transformer_encoder.18} parent=0 // pred_fallthru
    _
  // Predicated region
  $region14: #{transformer_encoder.18} parent=0 // pred_check
    _
  $region15: #{transformer_encoder.18} parent=0 // pred_check_branch
    %17 = sbr.rel (0) target = $region17
  $region16: #{transformer_encoder.18} parent=0 // pred_region
    _
  $region17: #{transformer_encoder.18} parent=0 // pred_fallthru
    _
  // Predicated region
  $region18: #{transformer_encoder.18} parent=0 // pred_check
    _
  $region19: #{transformer_encoder.18} parent=0 // pred_check_branch
    %19 = sbr.rel (0) target = $region21
  $region20: #{transformer_encoder.18} parent=0 // pred_region
    _
  $region21: #{transformer_encoder.18} parent=0 // pred_fallthru
    _
  %p20 = scmp.eq.s32.totalorder 0, 0
  // Predicated region
  $region22: #{transformer_encoder.18} parent=0 // pred_check
    %p21 = pneg %p20
  $region23: #{transformer_encoder.18} parent=0 // pred_check_branch
    %23 = sbr.rel (%p21) target = $region25
  $region24: #{transformer_encoder.18} parent=0 // pred_region
    %24 = vst [vmem:[#allocation2] sm:$0xff] 0.0
    %25 = vst [vmem:[#allocation2 + $0x8] sm:$0xff] 0.0
  $region25: #{transformer_encoder.18} parent=0 // pred_fallthru
    _
  %v26 = vld [vmem:[%s0] sm:$0xff]
  %v27 = vld [vmem:[%s0 + $0x8] sm:$0xff]
  %v28 = vld [vmem:[%s1] sm:$0xff]
  %v29 = vld [vmem:[%s1 + $0x8] sm:$0xff]
  %v30 = vld [vmem:[%s1 + $0x10] sm:$0xff]
  %v31 = vld [vmem:[%s1 + $0x18] sm:$0xff]
  %v32 = vld [vmem:[%s1 + $0x20] sm:$0xff]
  %v33 = vld [vmem:[%s1 + $0x28] sm:$0xff]
  %v34 = vld [vmem:[%s1 + $0x30] sm:$0xff]
  %v35 = vld [vmem:[%s1 + $0x38] sm:$0xff]
  %v36 = vld [vmem:[%s1 + $0x40] sm:$0xff]
  %v37 = vld [vmem:[%s1 + $0x48] sm:$0xff]
  %v38 = vld [vmem:[%s1 + $0x50] sm:$0xff]
  %v39 = vld [vmem:[%s1 + $0x58] sm:$0xff]
  %v40 = vld [vmem:[%s1 + $0x60] sm:$0xff]
  %v41 = vld [vmem:[%s1 + $0x68] sm:$0xff]
  %v42 = vld [vmem:[%s1 + $0x70] sm:$0xff]
  %v43 = vld [vmem:[%s1 + $0x78] sm:$0xff]
  %v44 = vld [vmem:[%s2] sm:$0x1]
  %v46 = vperm.slane %v44, 0
  %48 = vmatpush.msra.mxu0 %v43
  %49 = vmatpush.msra.mxu0 %v42
  %50 = vmatpush.msra.mxu0 %v41
  %51 = vmatpush.msra.mxu0 %v40
  %52 = vmatpush.msra.mxu0 %v39
  %53 = vmatpush.msra.mxu0 %v38
  %54 = vmatpush.msra.mxu0 %v37
  %55 = vmatpush.msra.mxu0 %v36
  %56 = vmatpush.msra.mxu0 %v35
  %57 = vmatpush.msra.mxu0 %v34
  %58 = vmatpush.msra.mxu0 %v33
  %59 = vmatpush.msra.mxu0 %v32
  %60 = vmatpush.msra.mxu0 %v31
  %61 = vmatpush.msra.mxu0 %v30
  %62 = vmatpush.msra.mxu0 %v29
  %63 = vmatpush.msra.mxu0 %v28
  %64 = vmatmul.f32.gmra.mxu0 %v26
  %v65 = vpop.f32.mrf.mxu0
  %v66 = vadd.f32 %v46, %v65
  %67 = vmatmul.f32.gmra.mxu0 %v27
  %v68 = vpop.f32.mrf.mxu0
  %v69 = vadd.f32 %v46, %v68
  %70 = vdwg.mxu0
  %v71 = vmax.f32 %v66, 0.0
  %v72 = vmax.f32 %v69, 0.0
  %v73 = vld [vmem:[#allocation2] sm:$0xff]
  %v74 = vld [vmem:[#allocation2 + $0x8] sm:$0xff]
  %v75 = vld [vmem:[%s3] sm:$0xff]
  %v76 = vld [vmem:[%s3 + $0x8] sm:$0xff]
  %v77 = vld [vmem:[%s3 + $0x10] sm:$0xff]
  %v78 = vld [vmem:[%s3 + $0x18] sm:$0xff]
  %v79 = vld [vmem:[%s3 + $0x20] sm:$0xff]
  %v80 = vld [vmem:[%s3 + $0x28] sm:$0xff]
  %v81 = vld [vmem:[%s3 + $0x30] sm:$0xff]
  %v82 = vld [vmem:[%s3 + $0x38] sm:$0xff]
  %v83 = vld [vmem:[%s3 + $0x40] sm:$0xff]
  %v84 = vld [vmem:[%s3 + $0x48] sm:$0xff]
  %v85 = vld [vmem:[%s3 + $0x50] sm:$0xff]
  %v86 = vld [vmem:[%s3 + $0x58] sm:$0xff]
  %v87 = vld [vmem:[%s3 + $0x60] sm:$0xff]
  %v88 = vld [vmem:[%s3 + $0x68] sm:$0xff]
  %v89 = vld [vmem:[%s3 + $0x70] sm:$0xff]
  %v90 = vld [vmem:[%s3 + $0x78] sm:$0xff]
  %91 = vmatpush.msra.mxu0 %v90
  %92 = vmatpush.msra.mxu0 %v89
  %93 = vmatpush.msra.mxu0 %v88
  %94 = vmatpush.msra.mxu0 %v87
  %95 = vmatpush.msra.mxu0 %v86
  %96 = vmatpush.msra.mxu0 %v85
  %97 = vmatpush.msra.mxu0 %v84
  %98 = vmatpush.msra.mxu0 %v83
  %99 = vmatpush.msra.mxu0 %v82
  %100 = vmatpush.msra.mxu0 %v81
  %101 = vmatpush.msra.mxu0 %v80
  %102 = vmatpush.msra.mxu0 %v79
  %103 = vmatpush.msra.mxu0 %v78
  %104 = vmatpush.msra.mxu0 %v77
  %105 = vmatpush.msra.mxu0 %v76
  %106 = vmatpush.msra.mxu0 %v75
  %107 = vmatmul.f32.gmra.mxu0 %v71
  %v108 = vpop.f32.mrf.mxu0
  %v109 = vadd.f32 0.0, %v108
  %110 = vmatmul.f32.gmra.mxu0 %v72
  %v111 = vpop.f32.mrf.mxu0
  %v112 = vadd.f32 0.0, %v111
  %113 = vdwg.mxu0
  %v114 = vadd.f32 %v73, %v109
  %v115 = vadd.f32 %v74, %v112
  %116 = vst [vmem:[#allocation2] sm:$0xff] %v114
  %117 = vst [vmem:[#allocation2 + $0x8] sm:$0xff] %v115
  // Predicated region
  $region26: #{transformer_encoder.18} parent=0 // pred_check
    %p118 = pneg %p20
  $region27: #{transformer_encoder.18} parent=0 // pred_check_branch
    %120 = sbr.rel (%p118) target = $region29
  $region28: #{transformer_encoder.18} parent=0 // pred_region
    %v121 = vld [vmem:[#allocation2] sm:$0xff]
    %v122 = vld [vmem:[#allocation2 + $0x8] sm:$0xff]
    %v123 = vld [vmem:[%s4] sm:$0x1]
    %v125 = vperm.slane %v123, 0
    %v127 = vadd.f32 %v121, %v125
    %v128 = vadd.f32 %v122, %v125
    %129 = vst [vmem:[%s5] sm:$0xff] %v127
    %130 = vst [vmem:[%s5 + $0x8] sm:$0xff] %v128
  $region29: #{transformer_encoder.18} parent=0 // pred_fallthru
    _
  // Predicated region
  $region30: #{transformer_encoder.18} parent=0 // pred_check
    _
  $region31: #{transformer_encoder.18} parent=0 // pred_check_branch
    %132 = sbr.rel (0) target = $region33
  $region32: #{transformer_encoder.18} parent=0 // pred_region
    _
  $region33: #{transformer_encoder.18} parent=0 // pred_fallthru
    _
  // Predicated region
  $region34: #{transformer_encoder.18} parent=0 // pred_check
    _
  $region35: #{transformer_encoder.18} parent=0 // pred_check_branch
    %134 = sbr.rel (0) target = $region37
  $region36: #{transformer_encoder.18} parent=0 // pred_region
    _
  $region37: #{transformer_encoder.18} parent=0 // pred_fallthru
    _

</llo_original>
